<compile_context>
chip_gen: v6e
topology: v6e:2x2x1
jax: 0.10.0
libtpu: 0.0.40
codegen_flags: <defaults>
</compile_context>

<pallas_src>
import functools

import jax
import jax.numpy as jnp
from jax import lax
from jax.experimental import pallas as pl
from jax.experimental.pallas import tpu as pltpu

# Safe on v7x (64 MiB physical VMEM per TensorCore) and generous on v5e/v6e.
_VMEM_LIMIT = 40 * 1024 * 1024


def _round_up(x, m):
    return (x + m - 1) // m * m


# ----------------------------------------------------------------------------
# Pallas kernels
# ----------------------------------------------------------------------------
def _matmul_bn_act_kernel(*refs, apply_relu, has_residual):
    if has_residual:
        a_ref, b_ref, s_ref, bias_ref, r_ref, o_ref = refs
    else:
        a_ref, b_ref, s_ref, bias_ref, o_ref = refs
    # bf16 x bf16 on the MXU, f32 accumulation.
    acc = jnp.dot(a_ref[...], b_ref[...], preferred_element_type=jnp.float32)
    acc = acc * s_ref[...] + bias_ref[...]
    if has_residual:
        acc = acc + r_ref[...].astype(jnp.float32)
    if apply_relu:
        acc = jnp.maximum(acc, 0.0)
    o_ref[...] = acc.astype(o_ref.dtype)


def matmul_bn_act(a, b, scale, bias, residual=None, apply_relu=True,
                  out_dtype=jnp.bfloat16):
    """out = act((a @ b) * scale + bias [+ residual]);  a:(M,K) b:(K,N)."""
    M, K = a.shape
    _, N = b.shape
    a = a.astype(jnp.bfloat16)
    b = b.astype(jnp.bfloat16)

    # M tiling: large tiles for the big early layers (better HBM utilization),
    # single full-M block for the small deep-stage matmuls.
    TM = 512 if M >= 512 else M
    # N tiling: restores megacore parallelism when M tiles are few and keeps
    # the resident B tile small for N=1024/2048 layers.
    TN = N if N <= 512 else 512

    scale2 = scale.reshape(1, N).astype(jnp.float32)
    bias2 = bias.reshape(1, N).astype(jnp.float32)

    in_specs = [
        pl.BlockSpec((TM, K), lambda i, j: (i, 0)),
        pl.BlockSpec((K, TN), lambda i, j: (0, j)),
        pl.BlockSpec((1, TN), lambda i, j: (0, j)),
        pl.BlockSpec((1, TN), lambda i, j: (0, j)),
    ]
    args = [a, b, scale2, bias2]
    if residual is not None:
        residual = residual.astype(jnp.bfloat16)
        in_specs.append(pl.BlockSpec((TM, TN), lambda i, j: (i, j)))
        args.append(residual)

    kernel = functools.partial(
        _matmul_bn_act_kernel,
        apply_relu=apply_relu,
        has_residual=residual is not None,
    )
    out = pl.pallas_call(
        kernel,
        out_shape=jax.ShapeDtypeStruct((M, N), out_dtype),
        grid=(pl.cdiv(M, TM), pl.cdiv(N, TN)),
        in_specs=in_specs,
        out_specs=pl.BlockSpec((TM, TN), lambda i, j: (i, j)),
        compiler_params=pltpu.CompilerParams(
            dimension_semantics=("parallel", "parallel"),
            vmem_limit_bytes=_VMEM_LIMIT,
        ),
    )(*args)
    return out


def _max9_kernel(*refs):
    o_ref = refs[-1]
    acc = refs[0][...]
    for r in refs[1:-1]:
        acc = jnp.maximum(acc, r[...])
    o_ref[...] = acc


def max_of_9(slabs, M, C, dtype):
    """Elementwise max over 9 (M, C) slabs (MaxPool window reduction)."""
    TM = 256 if M >= 256 else M
    out = pl.pallas_call(
        _max9_kernel,
        out_shape=jax.ShapeDtypeStruct((M, C), dtype),
        grid=(pl.cdiv(M, TM),),
        in_specs=[pl.BlockSpec((TM, C), lambda i: (i, 0))] * 9,
        out_specs=pl.BlockSpec((TM, C), lambda i: (i, 0)),
        compiler_params=pltpu.CompilerParams(
            dimension_semantics=("parallel",),
            vmem_limit_bytes=_VMEM_LIMIT,
        ),
    )(*slabs)
    return out


def _avgpool_fc_kernel(x_ref, w_ref, b_ref, o_ref):
    pooled = jnp.mean(x_ref[...].astype(jnp.float32), axis=1)      # (N, C)
    o_ref[...] = (
        jnp.dot(pooled.astype(jnp.bfloat16), w_ref[...],
                preferred_element_type=jnp.float32)
        + b_ref[...]
    )


def avgpool_fc(x, w, b):
    """x: (N, H*W, C) -> global-avg-pool + fc -> (N, num_classes)."""
    N, HW, C = x.shape
    K, NC = w.shape
    NCp = _round_up(NC, 128)                     # 1000 -> 1024: lane-dense
    if NCp != NC:
        w = jnp.pad(w, ((0, 0), (0, NCp - NC)))
        b = jnp.pad(b, (0, NCp - NC))
    x = x.astype(jnp.bfloat16)
    w = w.astype(jnp.bfloat16)
    b2 = b.reshape(1, NCp).astype(jnp.float32)
    out = pl.pallas_call(
        _avgpool_fc_kernel,
        out_shape=jax.ShapeDtypeStruct((N, NCp), jnp.float32),
        grid=(1,),
        in_specs=[
            pl.BlockSpec((N, HW, C), lambda i: (0, 0, 0)),
            pl.BlockSpec((K, NCp), lambda i: (0, 0)),
            pl.BlockSpec((1, NCp), lambda i: (0, 0)),
        ],
        out_specs=pl.BlockSpec((N, NCp), lambda i: (0, 0)),
        compiler_params=pltpu.CompilerParams(vmem_limit_bytes=_VMEM_LIMIT),
    )(x, w, b2)
    return out[:, :NC]


# ----------------------------------------------------------------------------
# Plain-JAX glue: im2col patch extraction (layout plumbing only)
# ----------------------------------------------------------------------------
def extract_patches(x, kh, kw, stride, pad):
    """x: NHWC -> (N, Ho, Wo, C*kh*kw); feature order is (C, kh, kw)."""
    if kh == 1 and kw == 1 and pad == 0:
        if stride > 1:
            x = x[:, ::stride, ::stride, :]
        return x
    return lax.conv_general_dilated_patches(
        x,
        filter_shape=(kh, kw),
        window_strides=(stride, stride),
        padding=[(pad, pad), (pad, pad)],
        dimension_numbers=("NHWC", "HWIO", "NHWC"),
    )


def conv_bn(x, p, kh, kw, stride, pad, relu=True, residual=None):
    """Conv(kxk,stride,pad,bias=False) + folded BN (+residual) (+ReLU)."""
    N = x.shape[0]
    patches = extract_patches(x, kh, kw, stride, pad)
    Ho, Wo, K = patches.shape[1], patches.shape[2], patches.shape[3]
    a = patches.reshape(N * Ho * Wo, K).astype(jnp.bfloat16)
    Kw = p["w"].shape[0]
    if Kw > K:                                   # stem: K=147 padded to 256
        a = jnp.pad(a, ((0, 0), (0, Kw - K)))
    res2 = None
    if residual is not None:
        res2 = residual.reshape(N * Ho * Wo, residual.shape[-1])
    cout = p["w"].shape[1]
    out = matmul_bn_act(a, p["w"], p["scale"], p["bias"],
                        residual=res2, apply_relu=relu)
    return out.reshape(N, Ho, Wo, cout)


def maxpool_3x3_s2(x):
    """3x3/s2/pad1 max pool; zero padding is valid because input is post-ReLU."""
    N, H, W, C = x.shape
    Ho = (H + 2 - 3) // 2 + 1
    Wo = (W + 2 - 3) // 2 + 1
    xp = jnp.pad(x, ((0, 0), (1, 1), (1, 1), (0, 0)))
    slabs = []
    for dh in range(3):
        for dw in range(3):
            s = lax.slice(
                xp,
                (0, dh, dw, 0),
                (N, dh + 2 * Ho - 1, dw + 2 * Wo - 1, C),
                (1, 2, 2, 1),
            )
            slabs.append(s.reshape(N * Ho * Wo, C))
    out = max_of_9(slabs, N * Ho * Wo, C, x.dtype)
    return out.reshape(N, Ho, Wo, C)


# ----------------------------------------------------------------------------
# Parameters (deterministic synthetic init, matching torchvision shapes)
# ----------------------------------------------------------------------------
def make_conv_bn_params(key, cin, cout, kh, kw, k_pad_to=None):
    # Conv weight stored directly in matmul form (cin*kh*kw, cout) bf16,
    # matching the (C, kh, kw) patch feature ordering.
    fan_out = cout * kh * kw
    k = cin * kh * kw
    w = jax.random.normal(key, (k, cout), jnp.float32)
    w = w * jnp.sqrt(2.0 / fan_out)
    if k_pad_to is not None and k_pad_to > k:
        w = jnp.pad(w, ((0, k_pad_to - k), (0, 0)))   # zero rows: no-op math
    w = w.astype(jnp.bfloat16)
    gamma = jnp.ones((cout,), jnp.float32)
    beta = jnp.zeros((cout,), jnp.float32)
    running_mean = jnp.zeros((cout,), jnp.float32)
    running_var = jnp.ones((cout,), jnp.float32)
    eps = 1e-5
    scale = gamma / jnp.sqrt(running_var + eps)
    bias = beta - running_mean * scale
    return {"w": w, "scale": scale, "bias": bias}


def make_resnet101_params(key, num_classes=1000):
    counter = [0]

    def nk():
        counter[0] += 1
        return jax.random.fold_in(key, counter[0])

    # Stem K = 3*7*7 = 147 -> pad to 256 for lane-aligned MXU feeds.
    params = {"conv1": make_conv_bn_params(nk(), 3, 64, 7, 7, k_pad_to=256)}

    layers_cfg = [(64, 3, 1), (128, 4, 2), (256, 23, 2), (512, 3, 2)]
    inplanes = 64
    layers = []
    for planes, nblocks, stride in layers_cfg:
        blocks = []
        for b in range(nblocks):
            s = stride if b == 0 else 1
            blk = {
                "conv1": make_conv_bn_params(nk(), inplanes, planes, 1, 1),
                "conv2": make_conv_bn_params(nk(), planes, planes, 3, 3),
                "conv3": make_conv_bn_params(nk(), planes, planes * 4, 1, 1),
                "stride": s,
            }
            if b == 0 and (s != 1 or inplanes != planes * 4):
                blk["downsample"] = make_conv_bn_params(
                    nk(), inplanes, planes * 4, 1, 1)
            blocks.append(blk)
            inplanes = planes * 4
        layers.append(blocks)
    params["layers"] = layers

    fan_in = 512 * 4
    bound = 1.0 / float(jnp.sqrt(fan_in))
    params["fc_w"] = jax.random.uniform(
        nk(), (fan_in, num_classes), jnp.float32, -bound, bound)
    params["fc_b"] = jax.random.uniform(
        nk(), (num_classes,), jnp.float32, -bound, bound)
    return params


# ----------------------------------------------------------------------------
# Forward pass (torchvision ResNet-101: Bottleneck [3, 4, 23, 3])
# ----------------------------------------------------------------------------
def bottleneck_forward(x, blk):
    identity = x
    out = conv_bn(x, blk["conv1"], 1, 1, 1, 0, relu=True)
    out = conv_bn(out, blk["conv2"], 3, 3, blk["stride"], 1, relu=True)
    if "downsample" in blk:
        identity = conv_bn(x, blk["downsample"], 1, 1, blk["stride"], 0,
                           relu=False)
    # conv3 + bn3, then residual add, then ReLU — all fused in the kernel.
    out = conv_bn(out, blk["conv3"], 1, 1, 1, 0, relu=True, residual=identity)
    return out


def resnet101_forward(params, x_nchw):
    # NCHW (PyTorch) -> NHWC bf16 for the TPU kernels.
    x = jnp.transpose(x_nchw, (0, 2, 3, 1)).astype(jnp.bfloat16)
    x = conv_bn(x, params["conv1"], 7, 7, 2, 3, relu=True)
    x = maxpool_3x3_s2(x)
    for blocks in params["layers"]:
        for blk in blocks:
            x = bottleneck_forward(x, blk)
    N, H, W, C = x.shape
    logits = avgpool_fc(x.reshape(N, H * W, C), params["fc_w"], params["fc_b"])
    return logits


if __name__ == "__main__":
    root = jax.random.PRNGKey(0)
    params = make_resnet101_params(jax.random.fold_in(root, 1))
    # ResNet stem requires 3 input channels; small spatial size 64x64.
    x = jax.random.normal(jax.random.fold_in(root, 2), (2, 3, 64, 64),
                          jnp.float32)
    logits = resnet101_forward(params, x)
    logits = jax.block_until_ready(logits)
    assert logits.shape == (2, 1000), logits.shape
    assert bool(jnp.all(jnp.isfinite(logits)))
    print("KERNEL_OK")
</pallas_src>

<mosaic_0001>
module attributes {stable_mosaic.version = 11 : i64} {
  func.func @_matmul_bn_act_kernel(%arg0: i32, %arg1: i32, %arg2: memref<512x256xbf16, #tpu.memory_space<vmem>>, %arg3: memref<256x64xbf16, #tpu.memory_space<vmem>>, %arg4: memref<1x64xf32, #tpu.memory_space<vmem>>, %arg5: memref<1x64xf32, #tpu.memory_space<vmem>>, %arg6: memref<512x64xbf16, #tpu.memory_space<vmem>>) attributes {dimension_semantics = [#tpu.dimension_semantics<parallel>, #tpu.dimension_semantics<parallel>], iteration_bounds = array<i64: 4, 1>, scalar_prefetch = 0 : i64, scratch_operands = 0 : i64, tpu.core_type = #tpu.core_type<tc>, window_params = [{transform_indices = @transform_0, window_bounds = array<i64: 512, 256>}, {transform_indices = @transform_1, window_bounds = array<i64: 256, 64>}, {transform_indices = @transform_2, window_bounds = array<i64: 1, 64>}, {transform_indices = @transform_3, window_bounds = array<i64: 1, 64>}, {transform_indices = @transform_4, window_bounds = array<i64: 512, 64>}]} {
    %c0 = arith.constant 0 : index
    %c0_0 = arith.constant 0 : index
    %0 = vector.load %arg2[%c0, %c0_0] : memref<512x256xbf16, #tpu.memory_space<vmem>>, vector<512x256xbf16>
    %c0_1 = arith.constant 0 : index
    %c0_2 = arith.constant 0 : index
    %1 = vector.load %arg3[%c0_1, %c0_2] : memref<256x64xbf16, #tpu.memory_space<vmem>>, vector<256x64xbf16>
    %cst = arith.constant dense<0.000000e+00> : vector<512x64xf32>
    %2 = tpu.matmul %0, %1, %cst {dimension_numbers = #tpu.dot_dimension_numbers<[1], [0], [0], [1], [0, 0, 1, 1], [], []>} : vector<512x256xbf16>, vector<256x64xbf16>, vector<512x64xf32> -> vector<512x64xf32>
    %c0_3 = arith.constant 0 : index
    %c0_4 = arith.constant 0 : index
    %3 = vector.load %arg4[%c0_3, %c0_4] : memref<1x64xf32, #tpu.memory_space<vmem>>, vector<1x64xf32>
    %4 = vector.broadcast %3 : vector<1x64xf32> to vector<512x64xf32>
    %5 = arith.mulf %2, %4 : vector<512x64xf32>
    %c0_5 = arith.constant 0 : index
    %c0_6 = arith.constant 0 : index
    %6 = vector.load %arg5[%c0_5, %c0_6] : memref<1x64xf32, #tpu.memory_space<vmem>>, vector<1x64xf32>
    %7 = vector.broadcast %6 : vector<1x64xf32> to vector<512x64xf32>
    %8 = arith.addf %5, %7 : vector<512x64xf32>
    %cst_7 = arith.constant 0.000000e+00 : f32
    %9 = vector.broadcast %cst_7 : f32 to vector<512x64xf32>
    %10 = arith.maximumf %8, %9 : vector<512x64xf32>
    %11 = arith.truncf %10 : vector<512x64xf32> to vector<512x64xbf16>
    %c0_8 = arith.constant 0 : index
    %c0_9 = arith.constant 0 : index
    %12 = vector.load %arg6[%c0_8, %c0_9] : memref<512x64xbf16, #tpu.memory_space<vmem>>, vector<512x64xbf16>
    tpu.vector_store %arg6[%c0_8, %c0_9], %11 {strides = array<i32>} : memref<512x64xbf16, #tpu.memory_space<vmem>>, vector<512x64xbf16>,
    return
  }
  func.func @transform_0(%arg0: i32, %arg1: i32) -> (i32, i32) {
    %c0_i32 = arith.constant 0 : i32
    %c0_i32_0 = arith.constant 0 : i32
    return %arg0, %c0_i32 : i32, i32
  }
  func.func @transform_1(%arg0: i32, %arg1: i32) -> (i32, i32) {
    %c0_i32 = arith.constant 0 : i32
    %c0_i32_0 = arith.constant 0 : i32
    return %c0_i32, %arg1 : i32, i32
  }
  func.func @transform_2(%arg0: i32, %arg1: i32) -> (i32, i32) {
    %c0_i32 = arith.constant 0 : i32
    %c0_i32_0 = arith.constant 0 : i32
    return %c0_i32, %arg1 : i32, i32
  }
  func.func @transform_3(%arg0: i32, %arg1: i32) -> (i32, i32) {
    %c0_i32 = arith.constant 0 : i32
    %c0_i32_0 = arith.constant 0 : i32
    return %c0_i32, %arg1 : i32, i32
  }
  func.func @transform_4(%arg0: i32, %arg1: i32) -> (i32, i32) {
    %c0_i32 = arith.constant 0 : i32
    return %arg0, %arg1 : i32, i32
  }
}

</mosaic_0001>

<llo_original>
// kernel: tpu_custom_call.1
$region0: #{tpu_custom_call.1}
  #allocation0 [shape = 'u32[]', space=smem, size = 0x4, offset = 0x4, fixed_abs, tag = 'smem constant byte address 0x4 - core index']
  #allocation1 [shape = 'u32[144,128]{1,0:T(1,128)}', space=vmem, size = 0x12000, scoped, tag = 'internal scratch']
  %s0 = inlined_call_operand.hbm [shape: bf16[2048,256], index: 0, kind: input, shape index: {}]
  %s1 = inlined_call_operand.vmem [shape: bf16[256,64], index: 1, kind: input, shape index: {}]
  %s2 = inlined_call_operand.vmem [shape: f32[1,64], index: 2, kind: input, shape index: {}]
  %s3 = inlined_call_operand.vmem [shape: f32[1,64], index: 3, kind: input, shape index: {}]
  %s4 = inlined_call_operand.vmem [shape: bf16[2048,64], index: 4, kind: output, shape index: {}]
  %s5 = sld [smem:[#allocation0]]
  $region53: #{tpu_custom_call.1} parent=0
    _
  %s7 = ssub.s32 1, %s5
  %s8 = scalar_select 0, %s7, %s5
  $region1: #{tpu_custom_call.1} parent=0
    #allocation2 [shape = 'u8[524288]{0}', space=vmem, size = 0x80000, scoped, tag = 'input window, operand 0']
    #allocation3 [shape = 's32[2]{0}', space=sflag, size = 0x8, scoped, tag = 'scoped memory for tpu_custom_call.1']
    %9 = vsyncpa [#allocation3], 0
    %s10 = scalar_lea.sflag [#allocation3], 1
    %11 = vsyncpa %s10, 0
    loop: start=0, step=1, limit=6
    $region2: #{tpu_custom_call.1} parent=1 // loop_pre_header
      _
    $region3: #{tpu_custom_call.1} parent=1 // loop_header
      %s13 = sphi 0, %s17
      %p14 = scmp.ge.s32.totalorder %s13, 6
      %s20 = sphi 0, %s32
      %s21 = sphi 0, %s28
      %s22 = sphi 0, %s20
      %s23 = sphi 0, %s21
      %s24 = sphi 0, %s22
      %s25 = sphi 0, %s23
      %s35 = sphi 0, %s37
      %s38 = sphi 0, %s35
      %s39 = sphi 0, %s38
      %s55 = sphi 0, %s39
      %s61 = sphi 0, %s63
      %s64 = sphi 0, %s61
      %s65 = sphi 0, %s64
      %s81 = sphi 0, %s65
      %s87 = sphi 0, %s89
      %s90 = sphi 0, %s87
      %s91 = sphi 0, %s90
      %s107 = sphi 0, %s91
      %s113 = sphi 0, %s115
      %s116 = sphi 0, %s113
      %s117 = sphi 0, %s116
      %s133 = sphi 0, %s117
      %s141 = sphi 0, %s143
      %s144 = sphi 0, %s141
      %s145 = sphi 0, %s144
      %s161 = sphi 0, %s145
    $region4: #{tpu_custom_call.1} parent=1 // loop_header_branch
      %16 = sbr.rel (%p14) target = $region8
    $region5: #{tpu_custom_call.1} parent=1 // loop_body
      %s18 = ssub.s32 %s13, 1
      %s19 = ssub.s32 %s13, 2
      %s26 = sadd.s32 1, %s21
      %p27 = scmp.ge.s32.totalorder %s26, 1
      %s28 = scalar_select %p27, 0, %s26
      %s29 = sadd.s32 1, %s20
      %s30 = scalar_select %p27, %s29, %s20
      %p31 = scmp.ge.s32.totalorder %s30, 4
      %s32 = scalar_select %p31, 0, %s30
      %s33 = ssub.s32 %s20, %s32
      %p34 = scmp.eq.s32.totalorder %s33, 0
      %s36 = sadd.s32 %s35, 1
      %s37 = scalar_select %p34, %s35, %s36
      %p40 = pneg %p34
      %p41 = scmp.eq.s32.totalorder %s13, 3
      %p42 = por %p40, %p41
      %p43 = scmp.ne.s32.totalorder %s35, %s38
      %p44 = scmp.eq.s32.totalorder %s13, 0
      %p45 = por %p43, %p44
      %p46 = scmp.ne.s32.totalorder %s35, %s38
      %p47 = scmp.eq.s32.totalorder %s18, 3
      %p48 = por %p46, %p47
      %p49 = scmp.ne.s32.totalorder %s38, %s39
      %p50 = scmp.eq.s32.totalorder %s18, 0
      %p51 = por %p49, %p50
      %p52 = scmp.ne.s32.totalorder %s38, %s39
      %p53 = scmp.eq.s32.totalorder %s19, 3
      %p54 = por %p52, %p53
      %p56 = scmp.ne.s32.totalorder %s39, %s55
      %p57 = scmp.eq.s32.totalorder %s19, 0
      %p58 = por %p56, %p57
      %s59 = ssub.s32 %s21, %s28
      %p60 = scmp.eq.s32.totalorder %s59, 0
      %s62 = sadd.s32 %s61, 1
      %s63 = scalar_select %p60, %s61, %s62
      %p66 = pneg %p60
      %p67 = scmp.eq.s32.totalorder %s13, 3
      %p68 = por %p66, %p67
      %p69 = scmp.ne.s32.totalorder %s61, %s64
      %p70 = scmp.eq.s32.totalorder %s13, 0
      %p71 = por %p69, %p70
      %p72 = scmp.ne.s32.totalorder %s61, %s64
      %p73 = scmp.eq.s32.totalorder %s18, 3
      %p74 = por %p72, %p73
      %p75 = scmp.ne.s32.totalorder %s64, %s65
      %p76 = scmp.eq.s32.totalorder %s18, 0
      %p77 = por %p75, %p76
      %p78 = scmp.ne.s32.totalorder %s64, %s65
      %p79 = scmp.eq.s32.totalorder %s19, 3
      %p80 = por %p78, %p79
      %p82 = scmp.ne.s32.totalorder %s65, %s81
      %p83 = scmp.eq.s32.totalorder %s19, 0
      %p84 = por %p82, %p83
      %s85 = ssub.s32 %s21, %s28
      %p86 = scmp.eq.s32.totalorder %s85, 0
      %s88 = sadd.s32 %s87, 1
      %s89 = scalar_select %p86, %s87, %s88
      %p92 = pneg %p86
      %p93 = scmp.eq.s32.totalorder %s13, 3
      %p94 = por %p92, %p93
      %p95 = scmp.ne.s32.totalorder %s87, %s90
      %p96 = scmp.eq.s32.totalorder %s13, 0
      %p97 = por %p95, %p96
      %p98 = scmp.ne.s32.totalorder %s87, %s90
      %p99 = scmp.eq.s32.totalorder %s18, 3
      %p100 = por %p98, %p99
      %p101 = scmp.ne.s32.totalorder %s90, %s91
      %p102 = scmp.eq.s32.totalorder %s18, 0
      %p103 = por %p101, %p102
      %p104 = scmp.ne.s32.totalorder %s90, %s91
      %p105 = scmp.eq.s32.totalorder %s19, 3
      %p106 = por %p104, %p105
      %p108 = scmp.ne.s32.totalorder %s91, %s107
      %p109 = scmp.eq.s32.totalorder %s19, 0
      %p110 = por %p108, %p109
      %s111 = ssub.s32 %s21, %s28
      %p112 = scmp.eq.s32.totalorder %s111, 0
      %s114 = sadd.s32 %s113, 1
      %s115 = scalar_select %p112, %s113, %s114
      %p118 = pneg %p112
      %p119 = scmp.eq.s32.totalorder %s13, 3
      %p120 = por %p118, %p119
      %p121 = scmp.ne.s32.totalorder %s113, %s116
      %p122 = scmp.eq.s32.totalorder %s13, 0
      %p123 = por %p121, %p122
      %p124 = scmp.ne.s32.totalorder %s113, %s116
      %p125 = scmp.eq.s32.totalorder %s18, 3
      %p126 = por %p124, %p125
      %p127 = scmp.ne.s32.totalorder %s116, %s117
      %p128 = scmp.eq.s32.totalorder %s18, 0
      %p129 = por %p127, %p128
      %p130 = scmp.ne.s32.totalorder %s116, %s117
      %p131 = scmp.eq.s32.totalorder %s19, 3
      %p132 = por %p130, %p131
      %p134 = scmp.ne.s32.totalorder %s117, %s133
      %p135 = scmp.eq.s32.totalorder %s19, 0
      %p136 = por %p134, %p135
      %s137 = ssub.s32 %s20, %s32
      %s138 = ssub.s32 %s21, %s28
      %s139 = sor.u32 %s137, %s138
      %p140 = scmp.eq.s32.totalorder %s139, 0
      %s142 = sadd.s32 %s141, 1
      %s143 = scalar_select %p140, %s141, %s142
      %p146 = pneg %p140
      %p147 = scmp.eq.s32.totalorder %s13, 3
      %p148 = por %p146, %p147
      %p149 = scmp.ne.s32.totalorder %s141, %s144
      %p150 = scmp.eq.s32.totalorder %s13, 0
      %p151 = por %p149, %p150
      %p152 = scmp.ne.s32.totalorder %s141, %s144
      %p153 = scmp.eq.s32.totalorder %s18, 3
      %p154 = por %p152, %p153
      %p155 = scmp.ne.s32.totalorder %s144, %s145
      %p156 = scmp.eq.s32.totalorder %s18, 0
      %p157 = por %p155, %p156
      %p158 = scmp.ne.s32.totalorder %s144, %s145
      %p159 = scmp.eq.s32.totalorder %s19, 3
      %p160 = por %p158, %p159
      %p162 = scmp.ne.s32.totalorder %s145, %s161
      %p163 = scmp.eq.s32.totalorder %s19, 0
      %p164 = por %p162, %p163
      %p165 = scmp.le.s32.totalorder 1, %s13
      %p166 = scmp.lt.s32.totalorder %s13, 5
      %p167 = pnand %p165, %p166
      %p168 = pneg %p167
      // Predicated region
      $region9: #{tpu_custom_call.1} parent=5 // pred_check
        _
      $region10: #{tpu_custom_call.1} parent=5 // pred_check_branch
        %170 = sbr.rel (%p167) target = $region12
      $region11: #{tpu_custom_call.1} parent=5 // pred_region
        %s171 = ssub.s32 %s13, 1
        // Predicated region
        $region13: #{tpu_custom_call.1} parent=11 // pred_check
          %p172 = pneg %p77
        $region14: #{tpu_custom_call.1} parent=11 // pred_check_branch
          %174 = sbr.rel (%p172) target = $region16
        $region15: #{tpu_custom_call.1} parent=11 // pred_region
          %p175 = scmp.lt.s32.totalorder %s23, 0
          %s176 = scalar_select %p175, %s23, 0
          %s177 = smul.addr %s176, 4
          %s178 = scalar_lea.vmem %s1, %s177
        $region16: #{tpu_custom_call.1} parent=11 // pred_fallthru
          _
        // Predicated region
        $region17: #{tpu_custom_call.1} parent=11 // pred_check
          %p179 = pneg %p103
        $region18: #{tpu_custom_call.1} parent=11 // pred_check_branch
          %181 = sbr.rel (%p179) target = $region20
        $region19: #{tpu_custom_call.1} parent=11 // pred_region
          %p182 = scmp.lt.s32.totalorder %s23, 0
          %s183 = scalar_select %p182, %s23, 0
          %s184 = scalar_lea.vmem %s2, %s183
        $region20: #{tpu_custom_call.1} parent=11 // pred_fallthru
          _
        // Predicated region
        $region21: #{tpu_custom_call.1} parent=11 // pred_check
          %p185 = pneg %p129
        $region22: #{tpu_custom_call.1} parent=11 // pred_check_branch
          %187 = sbr.rel (%p185) target = $region24
        $region23: #{tpu_custom_call.1} parent=11 // pred_region
          %p188 = scmp.lt.s32.totalorder %s23, 0
          %s189 = scalar_select %p188, %s23, 0
          %s190 = scalar_lea.vmem %s3, %s189
        $region24: #{tpu_custom_call.1} parent=11 // pred_fallthru
          _
      $region12: #{tpu_custom_call.1} parent=5 // pred_fallthru
        _
      %p191 = scmp.lt.s32.totalorder %s13, 4
      // Predicated region
      $region25: #{tpu_custom_call.1} parent=5 // pred_check
        %p192 = pneg %p191
      $region26: #{tpu_custom_call.1} parent=5 // pred_check_branch
        %194 = sbr.rel (%p192) target = $region28
      $region27: #{tpu_custom_call.1} parent=5 // pred_region
        // Predicated region
        $region29: #{tpu_custom_call.1} parent=27 // pred_check
          %p195 = pneg %p45
        $region30: #{tpu_custom_call.1} parent=27 // pred_check_branch
          %197 = sbr.rel (%p195) target = $region32
        $region31: #{tpu_custom_call.1} parent=27 // pred_region
          %s198 = sand.u32 %s35, 1
          %s199 = scalar_lea.sflag [#allocation3], %s198
          %s200 = sand.u32 %s35, 1
          %s201 = smul.addr %s200, 512
          %s202 = scalar_lea.vmem [#allocation2], %s201
          %s203 = smul.u32 64, %s20
          %s205 = ssub.s32 8192, 8192
          %206 = vsyncadd %s199, %s205
          %s207 = smul.addr %s203, 2
          %s208 = smul.addr %s207, 64
          %s209 = scalar_lea.hbm %s0, %s208
          %s210 = sshll.u32 %s202, 4
          %s211 = int_to_ptr.vmem [resolvable:$true] %s210
          %216 = dma.hbm_to_vmem [thread:$0]  %s209, 8192, %s211, %s199, 128, 128, 8
        $region32: #{tpu_custom_call.1} parent=27 // pred_fallthru
          _
      $region28: #{tpu_custom_call.1} parent=5 // pred_fallthru
        _
      %p217 = scmp.le.s32.totalorder 1, %s13
      %p218 = scmp.lt.s32.totalorder %s13, 5
      %p219 = pnand %p217, %p218
      %p220 = pneg %p219
      // Predicated region
      $region33: #{tpu_custom_call.1} parent=5 // pred_check
        _
      $region34: #{tpu_custom_call.1} parent=5 // pred_check_branch
        %222 = sbr.rel (%p219) target = $region36
      $region35: #{tpu_custom_call.1} parent=5 // pred_region
        %s223 = ssub.s32 %s13, 1
        %s224 = sand.u32 %s38, 1
        %s225 = scalar_lea.sflag [#allocation3], %s224
        %s226 = sand.u32 %s38, 1
        %s227 = smul.addr %s226, 512
        %s228 = scalar_lea.vmem [#allocation2], %s227
        // Predicated region
        $region37: #{tpu_custom_call.1} parent=35 // pred_check
          %p229 = pneg %p51
        $region38: #{tpu_custom_call.1} parent=35 // pred_check_branch
          %231 = sbr.rel (%p229) target = $region40
        $region39: #{tpu_custom_call.1} parent=35 // pred_region
          %232 = dma.done %s225, 8192
        $region40: #{tpu_custom_call.1} parent=35 // pred_fallthru
          _
        %s233 = sand.u32 %s38, 1
        %s234 = scalar_lea.sflag [#allocation3], %s233
        %s235 = sand.u32 %s38, 1
        %s236 = smul.addr %s235, 512
        %s237 = scalar_lea.vmem [#allocation2], %s236
        %p238 = pneg %p51
        %p239 = pneg %p48
        %p240 = scmp.lt.s32.totalorder %s23, 0
        %s241 = scalar_select %p240, %s23, 0
        %s242 = smul.addr %s241, 4
        %s243 = scalar_lea.vmem %s1, %s242
        %p244 = pneg %p77
        %p245 = pneg %p74
        %p246 = scmp.lt.s32.totalorder %s23, 0
        %s247 = scalar_select %p246, %s23, 0
        %s248 = scalar_lea.vmem %s2, %s247
        %p249 = pneg %p103
        %p250 = pneg %p100
        %p251 = scmp.lt.s32.totalorder %s23, 0
        %s252 = scalar_select %p251, %s23, 0
        %s253 = scalar_lea.vmem %s3, %s252
        %p254 = pneg %p129
        %p255 = pneg %p126
        %p256 = pneg %p157
        %p257 = pneg %p154
        %s258 = smul.u32 64, %s22
        %p259 = scmp.lt.s32.totalorder %s258, 255
        %s260 = scalar_select %p259, %s258, 255
        %p261 = scmp.lt.s32.totalorder %s23, 0
        %s262 = scalar_select %p261, %s23, 0
        %s263 = sadd.s32 %s262, %s260
        %s264 = smul.addr %s263, 4
        %s265 = scalar_lea.vmem %s4, %s264
        %s266 = smul.u32 64, %s22
        %p267 = scmp.lt.s32.totalorder %s23, 0
        %s268 = scalar_select %p267, %s23, 0
        %s269 = smul.addr %s268, 4
        %s270 = scalar_lea.vmem %s1, %s269
        %p271 = scmp.lt.s32.totalorder %s23, 0
        %s272 = scalar_select %p271, %s23, 0
        %s273 = scalar_lea.vmem %s2, %s272
        %p274 = scmp.lt.s32.totalorder %s23, 0
        %s275 = scalar_select %p274, %s23, 0
        %s276 = scalar_lea.vmem %s3, %s275
        %s277 = smul.u32 64, %s22
        %p278 = scmp.lt.s32.totalorder %s277, 255
        %s279 = scalar_select %p278, %s277, 255
        %p280 = scmp.lt.s32.totalorder %s23, 0
        %s281 = scalar_select %p280, %s23, 0
        %s282 = sadd.s32 %s281, %s279
        %s283 = smul.addr %s282, 4
        %s284 = scalar_lea.vmem %s4, %s283
        %s285 = smul.u32 64, %s22
        %v287 = vld [vmem:[%s228] sm:$0xff]
        %v288 = vld [vmem:[%s228 + $0x8] sm:$0xff]
        %v289 = vld [vmem:[%s228 + $0x10] sm:$0xff]
        %v290 = vld [vmem:[%s228 + $0x18] sm:$0xff]
        %v291 = vld [vmem:[%s228 + $0x20] sm:$0xff]
        %v292 = vld [vmem:[%s228 + $0x28] sm:$0xff]
        %v293 = vld [vmem:[%s228 + $0x30] sm:$0xff]
        %v294 = vld [vmem:[%s228 + $0x38] sm:$0xff]
        %v295 = vld [vmem:[%s228 + $0x40] sm:$0xff]
        %v296 = vld [vmem:[%s228 + $0x48] sm:$0xff]
        %v297 = vld [vmem:[%s228 + $0x50] sm:$0xff]
        %v298 = vld [vmem:[%s228 + $0x58] sm:$0xff]
        %v299 = vld [vmem:[%s228 + $0x60] sm:$0xff]
        %v300 = vld [vmem:[%s228 + $0x68] sm:$0xff]
        %v301 = vld [vmem:[%s228 + $0x70] sm:$0xff]
        %v302 = vld [vmem:[%s228 + $0x78] sm:$0xff]
        %v303 = vld [vmem:[%s228 + $0x80] sm:$0xff]
        %v304 = vld [vmem:[%s228 + $0x88] sm:$0xff]
        %v305 = vld [vmem:[%s228 + $0x90] sm:$0xff]
        %v306 = vld [vmem:[%s228 + $0x98] sm:$0xff]
        %v307 = vld [vmem:[%s228 + $0xa0] sm:$0xff]
        %v308 = vld [vmem:[%s228 + $0xa8] sm:$0xff]
        %v309 = vld [vmem:[%s228 + $0xb0] sm:$0xff]
        %v310 = vld [vmem:[%s228 + $0xb8] sm:$0xff]
        %v311 = vld [vmem:[%s228 + $0xc0] sm:$0xff]
        %v312 = vld [vmem:[%s228 + $0xc8] sm:$0xff]
        %v313 = vld [vmem:[%s228 + $0xd0] sm:$0xff]
        %v314 = vld [vmem:[%s228 + $0xd8] sm:$0xff]
        %v315 = vld [vmem:[%s228 + $0xe0] sm:$0xff]
        %v316 = vld [vmem:[%s228 + $0xe8] sm:$0xff]
        %v317 = vld [vmem:[%s228 + $0xf0] sm:$0xff]
        %v318 = vld [vmem:[%s228 + $0xf8] sm:$0xff]
        %v319 = vld [vmem:[%s228 + $0x100] sm:$0xff]
        %v320 = vld [vmem:[%s228 + $0x108] sm:$0xff]
        %v321 = vld [vmem:[%s228 + $0x110] sm:$0xff]
        %v322 = vld [vmem:[%s228 + $0x118] sm:$0xff]
        %v323 = vld [vmem:[%s228 + $0x120] sm:$0xff]
        %v324 = vld [vmem:[%s228 + $0x128] sm:$0xff]
        %v325 = vld [vmem:[%s228 + $0x130] sm:$0xff]
        %v326 = vld [vmem:[%s228 + $0x138] sm:$0xff]
        %v327 = vld [vmem:[%s228 + $0x140] sm:$0xff]
        %v328 = vld [vmem:[%s228 + $0x148] sm:$0xff]
        %v329 = vld [vmem:[%s228 + $0x150] sm:$0xff]
        %v330 = vld [vmem:[%s228 + $0x158] sm:$0xff]
        %v331 = vld [vmem:[%s228 + $0x160] sm:$0xff]
        %v332 = vld [vmem:[%s228 + $0x168] sm:$0xff]
        %v333 = vld [vmem:[%s228 + $0x170] sm:$0xff]
        %v334 = vld [vmem:[%s228 + $0x178] sm:$0xff]
        %v335 = vld [vmem:[%s228 + $0x180] sm:$0xff]
        %v336 = vld [vmem:[%s228 + $0x188] sm:$0xff]
        %v337 = vld [vmem:[%s228 + $0x190] sm:$0xff]
        %v338 = vld [vmem:[%s228 + $0x198] sm:$0xff]
        %v339 = vld [vmem:[%s228 + $0x1a0] sm:$0xff]
        %v340 = vld [vmem:[%s228 + $0x1a8] sm:$0xff]
        %v341 = vld [vmem:[%s228 + $0x1b0] sm:$0xff]
        %v342 = vld [vmem:[%s228 + $0x1b8] sm:$0xff]
        %v343 = vld [vmem:[%s228 + $0x1c0] sm:$0xff]
        %v344 = vld [vmem:[%s228 + $0x1c8] sm:$0xff]
        %v345 = vld [vmem:[%s228 + $0x1d0] sm:$0xff]
        %v346 = vld [vmem:[%s228 + $0x1d8] sm:$0xff]
        %v347 = vld [vmem:[%s228 + $0x1e0] sm:$0xff]
        %v348 = vld [vmem:[%s228 + $0x1e8] sm:$0xff]
        %v349 = vld [vmem:[%s228 + $0x1f0] sm:$0xff]
        %v350 = vld [vmem:[%s228 + $0x1f8] sm:$0xff]
        %v351 = vld [vmem:[%s270] sm:$0xf]
        %v352 = vld [vmem:[%s270 + $0x4] sm:$0xf]
        %v353 = vld [vmem:[%s270 + $0x8] sm:$0xf]
        %v354 = vld [vmem:[%s270 + $0xc] sm:$0xf]
        %v355 = vld [vmem:[%s270 + $0x10] sm:$0xf]
        %v356 = vld [vmem:[%s270 + $0x14] sm:$0xf]
        %v357 = vld [vmem:[%s270 + $0x18] sm:$0xf]
        %v358 = vld [vmem:[%s270 + $0x1c] sm:$0xf]
        %v359 = vld [vmem:[%s270 + $0x20] sm:$0xf]
        %v360 = vld [vmem:[%s270 + $0x24] sm:$0xf]
        %v361 = vld [vmem:[%s270 + $0x28] sm:$0xf]
        %v362 = vld [vmem:[%s270 + $0x2c] sm:$0xf]
        %v363 = vld [vmem:[%s270 + $0x30] sm:$0xf]
        %v364 = vld [vmem:[%s270 + $0x34] sm:$0xf]
        %v365 = vld [vmem:[%s270 + $0x38] sm:$0xf]
        %v366 = vld [vmem:[%s270 + $0x3c] sm:$0xf]
        %v367 = vld [vmem:[%s270 + $0x40] sm:$0xf]
        %v368 = vld [vmem:[%s270 + $0x44] sm:$0xf]
        %v369 = vld [vmem:[%s270 + $0x48] sm:$0xf]
        %v370 = vld [vmem:[%s270 + $0x4c] sm:$0xf]
        %v371 = vld [vmem:[%s270 + $0x50] sm:$0xf]
        %v372 = vld [vmem:[%s270 + $0x54] sm:$0xf]
        %v373 = vld [vmem:[%s270 + $0x58] sm:$0xf]
        %v374 = vld [vmem:[%s270 + $0x5c] sm:$0xf]
        %v375 = vld [vmem:[%s270 + $0x60] sm:$0xf]
        %v376 = vld [vmem:[%s270 + $0x64] sm:$0xf]
        %v377 = vld [vmem:[%s270 + $0x68] sm:$0xf]
        %v378 = vld [vmem:[%s270 + $0x6c] sm:$0xf]
        %v379 = vld [vmem:[%s270 + $0x70] sm:$0xf]
        %v380 = vld [vmem:[%s270 + $0x74] sm:$0xf]
        %v381 = vld [vmem:[%s270 + $0x78] sm:$0xf]
        %v382 = vld [vmem:[%s270 + $0x7c] sm:$0xf]
        %v447 = vunpack.c.l.b16 %v287
        %v448 = vunpack.c.h.b16 %v287
        %v449 = vunpack.c.l.b16 %v288
        %v450 = vunpack.c.h.b16 %v288
        %v451 = vunpack.c.l.b16 %v289
        %v452 = vunpack.c.h.b16 %v289
        %v453 = vunpack.c.l.b16 %v290
        %v454 = vunpack.c.h.b16 %v290
        %v455 = vunpack.c.l.b16 %v291
        %v456 = vunpack.c.h.b16 %v291
        %v457 = vunpack.c.l.b16 %v292
        %v458 = vunpack.c.h.b16 %v292
        %v459 = vunpack.c.l.b16 %v293
        %v460 = vunpack.c.h.b16 %v293
        %v461 = vunpack.c.l.b16 %v294
        %v462 = vunpack.c.h.b16 %v294
        %v463 = vunpack.c.l.b16 %v295
        %v464 = vunpack.c.h.b16 %v295
        %v465 = vunpack.c.l.b16 %v296
        %v466 = vunpack.c.h.b16 %v296
        %v467 = vunpack.c.l.b16 %v297
        %v468 = vunpack.c.h.b16 %v297
        %v469 = vunpack.c.l.b16 %v298
        %v470 = vunpack.c.h.b16 %v298
        %v471 = vunpack.c.l.b16 %v299
        %v472 = vunpack.c.h.b16 %v299
        %v473 = vunpack.c.l.b16 %v300
        %v474 = vunpack.c.h.b16 %v300
        %v475 = vunpack.c.l.b16 %v301
        %v476 = vunpack.c.h.b16 %v301
        %v477 = vunpack.c.l.b16 %v302
        %v478 = vunpack.c.h.b16 %v302
        %v479 = vunpack.c.l.b16 %v303
        %v480 = vunpack.c.h.b16 %v303
        %v481 = vunpack.c.l.b16 %v304
        %v482 = vunpack.c.h.b16 %v304
        %v483 = vunpack.c.l.b16 %v305
        %v484 = vunpack.c.h.b16 %v305
        %v485 = vunpack.c.l.b16 %v306
        %v486 = vunpack.c.h.b16 %v306
        %v487 = vunpack.c.l.b16 %v307
        %v488 = vunpack.c.h.b16 %v307
        %v489 = vunpack.c.l.b16 %v308
        %v490 = vunpack.c.h.b16 %v308
        %v491 = vunpack.c.l.b16 %v309
        %v492 = vunpack.c.h.b16 %v309
        %v493 = vunpack.c.l.b16 %v310
        %v494 = vunpack.c.h.b16 %v310
        %v495 = vunpack.c.l.b16 %v311
        %v496 = vunpack.c.h.b16 %v311
        %v497 = vunpack.c.l.b16 %v312
        %v498 = vunpack.c.h.b16 %v312
        %v499 = vunpack.c.l.b16 %v313
        %v500 = vunpack.c.h.b16 %v313
        %v501 = vunpack.c.l.b16 %v314
        %v502 = vunpack.c.h.b16 %v314
        %v503 = vunpack.c.l.b16 %v315
        %v504 = vunpack.c.h.b16 %v315
        %v505 = vunpack.c.l.b16 %v316
        %v506 = vunpack.c.h.b16 %v316
        %v507 = vunpack.c.l.b16 %v317
        %v508 = vunpack.c.h.b16 %v317
        %v509 = vunpack.c.l.b16 %v318
        %v510 = vunpack.c.h.b16 %v318
        %v511 = vunpack.c.l.b16 %v319
        %v512 = vunpack.c.h.b16 %v319
        %v513 = vunpack.c.l.b16 %v320
        %v514 = vunpack.c.h.b16 %v320
        %v515 = vunpack.c.l.b16 %v321
        %v516 = vunpack.c.h.b16 %v321
        %v517 = vunpack.c.l.b16 %v322
        %v518 = vunpack.c.h.b16 %v322
        %v519 = vunpack.c.l.b16 %v323
        %v520 = vunpack.c.h.b16 %v323
        %v521 = vunpack.c.l.b16 %v324
        %v522 = vunpack.c.h.b16 %v324
        %v523 = vunpack.c.l.b16 %v325
        %v524 = vunpack.c.h.b16 %v325
        %v525 = vunpack.c.l.b16 %v326
        %v526 = vunpack.c.h.b16 %v326
        %v527 = vunpack.c.l.b16 %v327
        %v528 = vunpack.c.h.b16 %v327
        %v529 = vunpack.c.l.b16 %v328
        %v530 = vunpack.c.h.b16 %v328
        %v531 = vunpack.c.l.b16 %v329
        %v532 = vunpack.c.h.b16 %v329
        %v533 = vunpack.c.l.b16 %v330
        %v534 = vunpack.c.h.b16 %v330
        %v535 = vunpack.c.l.b16 %v331
        %v536 = vunpack.c.h.b16 %v331
        %v537 = vunpack.c.l.b16 %v332
        %v538 = vunpack.c.h.b16 %v332
        %v539 = vunpack.c.l.b16 %v333
        %v540 = vunpack.c.h.b16 %v333
        %v541 = vunpack.c.l.b16 %v334
        %v542 = vunpack.c.h.b16 %v334
        %v543 = vunpack.c.l.b16 %v335
        %v544 = vunpack.c.h.b16 %v335
        %v545 = vunpack.c.l.b16 %v336
        %v546 = vunpack.c.h.b16 %v336
        %v547 = vunpack.c.l.b16 %v337
        %v548 = vunpack.c.h.b16 %v337
        %v549 = vunpack.c.l.b16 %v338
        %v550 = vunpack.c.h.b16 %v338
        %v551 = vunpack.c.l.b16 %v339
        %v552 = vunpack.c.h.b16 %v339
        %v553 = vunpack.c.l.b16 %v340
        %v554 = vunpack.c.h.b16 %v340
        %v555 = vunpack.c.l.b16 %v341
        %v556 = vunpack.c.h.b16 %v341
        %v557 = vunpack.c.l.b16 %v342
        %v558 = vunpack.c.h.b16 %v342
        %v559 = vunpack.c.l.b16 %v343
        %v560 = vunpack.c.h.b16 %v343
        %v561 = vunpack.c.l.b16 %v344
        %v562 = vunpack.c.h.b16 %v344
        %v563 = vunpack.c.l.b16 %v345
        %v564 = vunpack.c.h.b16 %v345
        %v565 = vunpack.c.l.b16 %v346
        %v566 = vunpack.c.h.b16 %v346
        %v567 = vunpack.c.l.b16 %v347
        %v568 = vunpack.c.h.b16 %v347
        %v569 = vunpack.c.l.b16 %v348
        %v570 = vunpack.c.h.b16 %v348
        %v571 = vunpack.c.l.b16 %v349
        %v572 = vunpack.c.h.b16 %v349
        %v573 = vunpack.c.l.b16 %v350
        %v574 = vunpack.c.h.b16 %v350
        %v575 = vpack.c.b16 %v449, %v447
        %v576 = vpack.c.b16 %v450, %v448
        %v577 = vpack.c.b16 %v453, %v451
        %v578 = vpack.c.b16 %v454, %v452
        %v579 = vpack.c.b16 %v457, %v455
        %v580 = vpack.c.b16 %v458, %v456
        %v581 = vpack.c.b16 %v461, %v459
        %v582 = vpack.c.b16 %v462, %v460
        %v583 = vpack.c.b16 %v465, %v463
        %v584 = vpack.c.b16 %v466, %v464
        %v585 = vpack.c.b16 %v469, %v467
        %v586 = vpack.c.b16 %v470, %v468
        %v587 = vpack.c.b16 %v473, %v471
        %v588 = vpack.c.b16 %v474, %v472
        %v589 = vpack.c.b16 %v477, %v475
        %v590 = vpack.c.b16 %v478, %v476
        %v591 = vpack.c.b16 %v481, %v479
        %v592 = vpack.c.b16 %v482, %v480
        %v593 = vpack.c.b16 %v485, %v483
        %v594 = vpack.c.b16 %v486, %v484
        %v595 = vpack.c.b16 %v489, %v487
        %v596 = vpack.c.b16 %v490, %v488
        %v597 = vpack.c.b16 %v493, %v491
        %v598 = vpack.c.b16 %v494, %v492
        %v599 = vpack.c.b16 %v497, %v495
        %v600 = vpack.c.b16 %v498, %v496
        %v601 = vpack.c.b16 %v501, %v499
        %v602 = vpack.c.b16 %v502, %v500
        %v603 = vpack.c.b16 %v505, %v503
        %v604 = vpack.c.b16 %v506, %v504
        %v605 = vpack.c.b16 %v509, %v507
        %v606 = vpack.c.b16 %v510, %v508
        %v607 = vpack.c.b16 %v513, %v511
        %v608 = vpack.c.b16 %v514, %v512
        %v609 = vpack.c.b16 %v517, %v515
        %v610 = vpack.c.b16 %v518, %v516
        %v611 = vpack.c.b16 %v521, %v519
        %v612 = vpack.c.b16 %v522, %v520
        %v613 = vpack.c.b16 %v525, %v523
        %v614 = vpack.c.b16 %v526, %v524
        %v615 = vpack.c.b16 %v529, %v527
        %v616 = vpack.c.b16 %v530, %v528
        %v617 = vpack.c.b16 %v533, %v531
        %v618 = vpack.c.b16 %v534, %v532
        %v619 = vpack.c.b16 %v537, %v535
        %v620 = vpack.c.b16 %v538, %v536
        %v621 = vpack.c.b16 %v541, %v539
        %v622 = vpack.c.b16 %v542, %v540
        %v623 = vpack.c.b16 %v545, %v543
        %v624 = vpack.c.b16 %v546, %v544
        %v625 = vpack.c.b16 %v549, %v547
        %v626 = vpack.c.b16 %v550, %v548
        %v627 = vpack.c.b16 %v553, %v551
        %v628 = vpack.c.b16 %v554, %v552
        %v629 = vpack.c.b16 %v557, %v555
        %v630 = vpack.c.b16 %v558, %v556
        %v631 = vpack.c.b16 %v561, %v559
        %v632 = vpack.c.b16 %v562, %v560
        %v633 = vpack.c.b16 %v565, %v563
        %v634 = vpack.c.b16 %v566, %v564
        %v635 = vpack.c.b16 %v569, %v567
        %v636 = vpack.c.b16 %v570, %v568
        %v637 = vpack.c.b16 %v573, %v571
        %v638 = vpack.c.b16 %v574, %v572
        %v735 = vunpack.c.l.b16 %v351
        %v736 = vunpack.c.l.b16 %v352
        %v737 = vunpack.c.l.b16 %v353
        %v738 = vunpack.c.l.b16 %v354
        %v739 = vunpack.c.l.b16 %v355
        %v740 = vunpack.c.l.b16 %v356
        %v741 = vunpack.c.l.b16 %v357
        %v742 = vunpack.c.l.b16 %v358
        %v743 = vunpack.c.l.b16 %v359
        %v744 = vunpack.c.l.b16 %v360
        %v745 = vunpack.c.l.b16 %v361
        %v746 = vunpack.c.l.b16 %v362
        %v747 = vunpack.c.l.b16 %v363
        %v748 = vunpack.c.l.b16 %v364
        %v749 = vunpack.c.l.b16 %v365
        %v750 = vunpack.c.l.b16 %v366
        %v751 = vunpack.c.l.b16 %v367
        %v752 = vunpack.c.l.b16 %v368
        %v753 = vunpack.c.l.b16 %v369
        %v754 = vunpack.c.l.b16 %v370
        %v755 = vunpack.c.l.b16 %v371
        %v756 = vunpack.c.l.b16 %v372
        %v757 = vunpack.c.l.b16 %v373
        %v758 = vunpack.c.l.b16 %v374
        %v759 = vunpack.c.l.b16 %v375
        %v760 = vunpack.c.l.b16 %v376
        %v761 = vunpack.c.l.b16 %v377
        %v762 = vunpack.c.l.b16 %v378
        %v763 = vunpack.c.l.b16 %v379
        %v764 = vunpack.c.l.b16 %v380
        %v765 = vunpack.c.l.b16 %v381
        %v766 = vunpack.c.l.b16 %v382
        %v767 = vpack.c.b16 %v736, %v735
        %v768 = vpack.c.b16 %v738, %v737
        %v769 = vpack.c.b16 %v740, %v739
        %v770 = vpack.c.b16 %v742, %v741
        %v771 = vpack.c.b16 %v744, %v743
        %v772 = vpack.c.b16 %v746, %v745
        %v773 = vpack.c.b16 %v748, %v747
        %v774 = vpack.c.b16 %v750, %v749
        %v775 = vpack.c.b16 %v752, %v751
        %v776 = vpack.c.b16 %v754, %v753
        %v777 = vpack.c.b16 %v756, %v755
        %v778 = vpack.c.b16 %v758, %v757
        %v779 = vpack.c.b16 %v760, %v759
        %v780 = vpack.c.b16 %v762, %v761
        %v781 = vpack.c.b16 %v764, %v763
        %v782 = vpack.c.b16 %v766, %v765
        %799 = vmatprep.subr.bf16.mxu0 0
        %800 = vmatpush1.bf16.msra.mxu0 %v774
        %801 = vmatprep.subr.bf16.mxu0 0
        %802 = vmatpush1.bf16.msra.mxu0 %v773
        %803 = vmatprep.subr.bf16.mxu0 0
        %804 = vmatpush1.bf16.msra.mxu0 %v772
        %805 = vmatprep.subr.bf16.mxu0 0
        %806 = vmatpush1.bf16.msra.mxu0 %v771
        %807 = vmatprep.subr.bf16.mxu0 0
        %808 = vmatpush1.bf16.msra.mxu0 %v770
        %809 = vmatprep.subr.bf16.mxu0 0
        %810 = vmatpush1.bf16.msra.mxu0 %v769
        %811 = vmatprep.subr.bf16.mxu0 0
        %812 = vmatpush1.bf16.msra.mxu0 %v768
        %813 = vmatprep.subr.bf16.mxu0 0
        %814 = vmatpush1.bf16.msra.mxu0 %v767
        %815 = vmatprep.subr.bf16.mxu0 0
        %816 = vmatpush2.bf16.msra.mxu0 %v782
        %817 = vmatprep.subr.bf16.mxu0 0
        %818 = vmatpush2.bf16.msra.mxu0 %v781
        %819 = vmatprep.subr.bf16.mxu0 0
        %820 = vmatpush2.bf16.msra.mxu0 %v780
        %821 = vmatprep.subr.bf16.mxu0 0
        %822 = vmatpush2.bf16.msra.mxu0 %v779
        %823 = vmatprep.subr.bf16.mxu0 0
        %824 = vmatpush2.bf16.msra.mxu0 %v778
        %825 = vmatprep.subr.bf16.mxu0 0
        %826 = vmatpush2.bf16.msra.mxu0 %v777
        %827 = vmatprep.subr.bf16.mxu0 0
        %828 = vmatpush2.bf16.msra.mxu0 %v776
        %829 = vmatprep.subr.bf16.mxu0 0
        %830 = vmatpush2.bf16.msra.mxu0 %v775
        %831 = vmatprep.mubr.bf16.mxu0 %v576
        %832 = vmatmul.mubr.bf16.gmra.mxu0 %v575
        %v833 = vpop.f32.mrf.mxu0
        %v834 = vadd.f32 0.0, %v833
        %v835 = vpop.f32.mrf.mxu0
        %v836 = vpop.f32.mrf.mxu0
        %v837 = vadd.f32 0.0, %v836
        %v838 = vpop.f32.mrf.mxu0
        %839 = vmatprep.mubr.bf16.mxu0 %v578
        %840 = vmatmul.mubr.bf16.gmra.mxu0 %v577
        %v841 = vpop.f32.mrf.mxu0
        %v842 = vadd.f32 0.0, %v841
        %v843 = vpop.f32.mrf.mxu0
        %v844 = vpop.f32.mrf.mxu0
        %v845 = vadd.f32 0.0, %v844
        %v846 = vpop.f32.mrf.mxu0
        %847 = vmatprep.mubr.bf16.mxu0 %v580
        %848 = vmatmul.mubr.bf16.gmra.mxu0 %v579
        %v849 = vpop.f32.mrf.mxu0
        %v850 = vadd.f32 0.0, %v849
        %v851 = vpop.f32.mrf.mxu0
        %v852 = vpop.f32.mrf.mxu0
        %v853 = vadd.f32 0.0, %v852
        %v854 = vpop.f32.mrf.mxu0
        %855 = vmatprep.mubr.bf16.mxu0 %v582
        %856 = vmatmul.mubr.bf16.gmra.mxu0 %v581
        %v857 = vpop.f32.mrf.mxu0
        %v858 = vadd.f32 0.0, %v857
        %v859 = vpop.f32.mrf.mxu0
        %v860 = vpop.f32.mrf.mxu0
        %v861 = vadd.f32 0.0, %v860
        %v862 = vpop.f32.mrf.mxu0
        %863 = vmatprep.mubr.bf16.mxu0 %v584
        %864 = vmatmul.mubr.bf16.gmra.mxu0 %v583
        %v865 = vpop.f32.mrf.mxu0
        %v866 = vadd.f32 0.0, %v865
        %v867 = vpop.f32.mrf.mxu0
        %v868 = vpop.f32.mrf.mxu0
        %v869 = vadd.f32 0.0, %v868
        %v870 = vpop.f32.mrf.mxu0
        %871 = vmatprep.mubr.bf16.mxu0 %v586
        %872 = vmatmul.mubr.bf16.gmra.mxu0 %v585
        %v873 = vpop.f32.mrf.mxu0
        %v874 = vadd.f32 0.0, %v873
        %v875 = vpop.f32.mrf.mxu0
        %v876 = vpop.f32.mrf.mxu0
        %v877 = vadd.f32 0.0, %v876
        %v878 = vpop.f32.mrf.mxu0
        %879 = vmatprep.mubr.bf16.mxu0 %v588
        %880 = vmatmul.mubr.bf16.gmra.mxu0 %v587
        %v881 = vpop.f32.mrf.mxu0
        %v882 = vadd.f32 0.0, %v881
        %v883 = vpop.f32.mrf.mxu0
        %v884 = vpop.f32.mrf.mxu0
        %v885 = vadd.f32 0.0, %v884
        %v886 = vpop.f32.mrf.mxu0
        %887 = vmatprep.mubr.bf16.mxu0 %v590
        %888 = vmatmul.mubr.bf16.gmra.mxu0 %v589
        %v889 = vpop.f32.mrf.mxu0
        %v890 = vadd.f32 0.0, %v889
        %v891 = vpop.f32.mrf.mxu0
        %v892 = vpop.f32.mrf.mxu0
        %v893 = vadd.f32 0.0, %v892
        %v894 = vpop.f32.mrf.mxu0
        %895 = vmatprep.mubr.bf16.mxu0 %v592
        %896 = vmatmul.mubr.bf16.gmra.mxu0 %v591
        %v897 = vpop.f32.mrf.mxu0
        %v898 = vadd.f32 0.0, %v897
        %v899 = vpop.f32.mrf.mxu0
        %v900 = vpop.f32.mrf.mxu0
        %v901 = vadd.f32 0.0, %v900
        %v902 = vpop.f32.mrf.mxu0
        %903 = vmatprep.mubr.bf16.mxu0 %v594
        %904 = vmatmul.mubr.bf16.gmra.mxu0 %v593
        %v905 = vpop.f32.mrf.mxu0
        %v906 = vadd.f32 0.0, %v905
        %v907 = vpop.f32.mrf.mxu0
        %v908 = vpop.f32.mrf.mxu0
        %v909 = vadd.f32 0.0, %v908
        %v910 = vpop.f32.mrf.mxu0
        %911 = vmatprep.mubr.bf16.mxu0 %v596
        %912 = vmatmul.mubr.bf16.gmra.mxu0 %v595
        %v913 = vpop.f32.mrf.mxu0
        %v914 = vadd.f32 0.0, %v913
        %v915 = vpop.f32.mrf.mxu0
        %v916 = vpop.f32.mrf.mxu0
        %v917 = vadd.f32 0.0, %v916
        %v918 = vpop.f32.mrf.mxu0
        %919 = vmatprep.mubr.bf16.mxu0 %v598
        %920 = vmatmul.mubr.bf16.gmra.mxu0 %v597
        %v921 = vpop.f32.mrf.mxu0
        %v922 = vadd.f32 0.0, %v921
        %v923 = vpop.f32.mrf.mxu0
        %v924 = vpop.f32.mrf.mxu0
        %v925 = vadd.f32 0.0, %v924
        %v926 = vpop.f32.mrf.mxu0
        %927 = vmatprep.mubr.bf16.mxu0 %v600
        %928 = vmatmul.mubr.bf16.gmra.mxu0 %v599
        %v929 = vpop.f32.mrf.mxu0
        %v930 = vadd.f32 0.0, %v929
        %v931 = vpop.f32.mrf.mxu0
        %v932 = vpop.f32.mrf.mxu0
        %v933 = vadd.f32 0.0, %v932
        %v934 = vpop.f32.mrf.mxu0
        %935 = vmatprep.mubr.bf16.mxu0 %v602
        %936 = vmatmul.mubr.bf16.gmra.mxu0 %v601
        %v937 = vpop.f32.mrf.mxu0
        %v938 = vadd.f32 0.0, %v937
        %v939 = vpop.f32.mrf.mxu0
        %v940 = vpop.f32.mrf.mxu0
        %v941 = vadd.f32 0.0, %v940
        %v942 = vpop.f32.mrf.mxu0
        %943 = vmatprep.mubr.bf16.mxu0 %v604
        %944 = vmatmul.mubr.bf16.gmra.mxu0 %v603
        %v945 = vpop.f32.mrf.mxu0
        %v946 = vadd.f32 0.0, %v945
        %v947 = vpop.f32.mrf.mxu0
        %v948 = vpop.f32.mrf.mxu0
        %v949 = vadd.f32 0.0, %v948
        %v950 = vpop.f32.mrf.mxu0
        %951 = vmatprep.mubr.bf16.mxu0 %v606
        %952 = vmatmul.mubr.bf16.gmra.mxu0 %v605
        %v953 = vpop.f32.mrf.mxu0
        %v954 = vadd.f32 0.0, %v953
        %v955 = vpop.f32.mrf.mxu0
        %v956 = vpop.f32.mrf.mxu0
        %v957 = vadd.f32 0.0, %v956
        %v958 = vpop.f32.mrf.mxu0
        %959 = vmatprep.mubr.bf16.mxu0 %v608
        %960 = vmatmul.mubr.bf16.gmra.mxu0 %v607
        %v961 = vpop.f32.mrf.mxu0
        %v962 = vadd.f32 0.0, %v961
        %v963 = vpop.f32.mrf.mxu0
        %v964 = vpop.f32.mrf.mxu0
        %v965 = vadd.f32 0.0, %v964
        %v966 = vpop.f32.mrf.mxu0
        %967 = vmatprep.mubr.bf16.mxu0 %v610
        %968 = vmatmul.mubr.bf16.gmra.mxu0 %v609
        %v969 = vpop.f32.mrf.mxu0
        %v970 = vadd.f32 0.0, %v969
        %v971 = vpop.f32.mrf.mxu0
        %v972 = vpop.f32.mrf.mxu0
        %v973 = vadd.f32 0.0, %v972
        %v974 = vpop.f32.mrf.mxu0
        %975 = vmatprep.mubr.bf16.mxu0 %v612
        %976 = vmatmul.mubr.bf16.gmra.mxu0 %v611
        %v977 = vpop.f32.mrf.mxu0
        %v978 = vadd.f32 0.0, %v977
        %v979 = vpop.f32.mrf.mxu0
        %v980 = vpop.f32.mrf.mxu0
        %v981 = vadd.f32 0.0, %v980
        %v982 = vpop.f32.mrf.mxu0
        %983 = vmatprep.mubr.bf16.mxu0 %v614
        %984 = vmatmul.mubr.bf16.gmra.mxu0 %v613
        %v985 = vpop.f32.mrf.mxu0
        %v986 = vadd.f32 0.0, %v985
        %v987 = vpop.f32.mrf.mxu0
        %v988 = vpop.f32.mrf.mxu0
        %v989 = vadd.f32 0.0, %v988
        %v990 = vpop.f32.mrf.mxu0
        %991 = vmatprep.mubr.bf16.mxu0 %v616
        %992 = vmatmul.mubr.bf16.gmra.mxu0 %v615
        %v993 = vpop.f32.mrf.mxu0
        %v994 = vadd.f32 0.0, %v993
        %v995 = vpop.f32.mrf.mxu0
        %v996 = vpop.f32.mrf.mxu0
        %v997 = vadd.f32 0.0, %v996
        %v998 = vpop.f32.mrf.mxu0
        %999 = vmatprep.mubr.bf16.mxu0 %v618
        %1000 = vmatmul.mubr.bf16.gmra.mxu0 %v617
        %v1001 = vpop.f32.mrf.mxu0
        %v1002 = vadd.f32 0.0, %v1001
        %v1003 = vpop.f32.mrf.mxu0
        %v1004 = vpop.f32.mrf.mxu0
        %v1005 = vadd.f32 0.0, %v1004
        %v1006 = vpop.f32.mrf.mxu0
        %1007 = vmatprep.mubr.bf16.mxu0 %v620
        %1008 = vmatmul.mubr.bf16.gmra.mxu0 %v619
        %v1009 = vpop.f32.mrf.mxu0
        %v1010 = vadd.f32 0.0, %v1009
        %v1011 = vpop.f32.mrf.mxu0
        %v1012 = vpop.f32.mrf.mxu0
        %v1013 = vadd.f32 0.0, %v1012
        %v1014 = vpop.f32.mrf.mxu0
        %1015 = vmatprep.mubr.bf16.mxu0 %v622
        %1016 = vmatmul.mubr.bf16.gmra.mxu0 %v621
        %v1017 = vpop.f32.mrf.mxu0
        %v1018 = vadd.f32 0.0, %v1017
        %v1019 = vpop.f32.mrf.mxu0
        %v1020 = vpop.f32.mrf.mxu0
        %v1021 = vadd.f32 0.0, %v1020
        %v1022 = vpop.f32.mrf.mxu0
        %1023 = vmatprep.mubr.bf16.mxu0 %v624
        %1024 = vmatmul.mubr.bf16.gmra.mxu0 %v623
        %v1025 = vpop.f32.mrf.mxu0
        %v1026 = vadd.f32 0.0, %v1025
        %v1027 = vpop.f32.mrf.mxu0
        %v1028 = vpop.f32.mrf.mxu0
        %v1029 = vadd.f32 0.0, %v1028
        %v1030 = vpop.f32.mrf.mxu0
        %1031 = vmatprep.mubr.bf16.mxu0 %v626
        %1032 = vmatmul.mubr.bf16.gmra.mxu0 %v625
        %v1033 = vpop.f32.mrf.mxu0
        %v1034 = vadd.f32 0.0, %v1033
        %v1035 = vpop.f32.mrf.mxu0
        %v1036 = vpop.f32.mrf.mxu0
        %v1037 = vadd.f32 0.0, %v1036
        %v1038 = vpop.f32.mrf.mxu0
        %1039 = vmatprep.mubr.bf16.mxu0 %v628
        %1040 = vmatmul.mubr.bf16.gmra.mxu0 %v627
        %v1041 = vpop.f32.mrf.mxu0
        %v1042 = vadd.f32 0.0, %v1041
        %v1043 = vpop.f32.mrf.mxu0
        %v1044 = vpop.f32.mrf.mxu0
        %v1045 = vadd.f32 0.0, %v1044
        %v1046 = vpop.f32.mrf.mxu0
        %1047 = vmatprep.mubr.bf16.mxu0 %v630
        %1048 = vmatmul.mubr.bf16.gmra.mxu0 %v629
        %v1049 = vpop.f32.mrf.mxu0
        %v1050 = vadd.f32 0.0, %v1049
        %v1051 = vpop.f32.mrf.mxu0
        %v1052 = vpop.f32.mrf.mxu0
        %v1053 = vadd.f32 0.0, %v1052
        %v1054 = vpop.f32.mrf.mxu0
        %1055 = vmatprep.mubr.bf16.mxu0 %v632
        %1056 = vmatmul.mubr.bf16.gmra.mxu0 %v631
        %v1057 = vpop.f32.mrf.mxu0
        %v1058 = vadd.f32 0.0, %v1057
        %v1059 = vpop.f32.mrf.mxu0
        %v1060 = vpop.f32.mrf.mxu0
        %v1061 = vadd.f32 0.0, %v1060
        %v1062 = vpop.f32.mrf.mxu0
        %1063 = vmatprep.mubr.bf16.mxu0 %v634
        %1064 = vmatmul.mubr.bf16.gmra.mxu0 %v633
        %v1065 = vpop.f32.mrf.mxu0
        %v1066 = vadd.f32 0.0, %v1065
        %v1067 = vpop.f32.mrf.mxu0
        %v1068 = vpop.f32.mrf.mxu0
        %v1069 = vadd.f32 0.0, %v1068
        %v1070 = vpop.f32.mrf.mxu0
        %1071 = vmatprep.mubr.bf16.mxu0 %v636
        %1072 = vmatmul.mubr.bf16.gmra.mxu0 %v635
        %v1073 = vpop.f32.mrf.mxu0
        %v1074 = vadd.f32 0.0, %v1073
        %v1075 = vpop.f32.mrf.mxu0
        %v1076 = vpop.f32.mrf.mxu0
        %v1077 = vadd.f32 0.0, %v1076
        %v1078 = vpop.f32.mrf.mxu0
        %1079 = vmatprep.mubr.bf16.mxu0 %v638
        %1080 = vmatmul.mubr.bf16.gmra.mxu0 %v637
        %v1081 = vpop.f32.mrf.mxu0
        %v1082 = vadd.f32 0.0, %v1081
        %v1083 = vpop.f32.mrf.mxu0
        %v1084 = vpop.f32.mrf.mxu0
        %v1085 = vadd.f32 0.0, %v1084
        %v1086 = vpop.f32.mrf.mxu0
        %1087 = vdwg.mxu0
        %v1088 = vld [vmem:[%s273] sm:$0x1]
        %v1090 = vlaneseq
        %v1091 = vshrl.u32 %v1090, 7
        %v1092 = vsub.s32 0, %v1091
        %v1093 = vrot.slane %v1088, %v1092
        %v1095 = vmul.f32 %v834, %v1093
        %v1096 = vmul.f32 %v837, %v1093
        %v1097 = vmul.f32 %v842, %v1093
        %v1098 = vmul.f32 %v845, %v1093
        %v1099 = vmul.f32 %v850, %v1093
        %v1100 = vmul.f32 %v853, %v1093
        %v1101 = vmul.f32 %v858, %v1093
        %v1102 = vmul.f32 %v861, %v1093
        %v1103 = vmul.f32 %v866, %v1093
        %v1104 = vmul.f32 %v869, %v1093
        %v1105 = vmul.f32 %v874, %v1093
        %v1106 = vmul.f32 %v877, %v1093
        %v1107 = vmul.f32 %v882, %v1093
        %v1108 = vmul.f32 %v885, %v1093
        %v1109 = vmul.f32 %v890, %v1093
        %v1110 = vmul.f32 %v893, %v1093
        %v1111 = vmul.f32 %v898, %v1093
        %v1112 = vmul.f32 %v901, %v1093
        %v1113 = vmul.f32 %v906, %v1093
        %v1114 = vmul.f32 %v909, %v1093
        %v1115 = vmul.f32 %v914, %v1093
        %v1116 = vmul.f32 %v917, %v1093
        %v1117 = vmul.f32 %v922, %v1093
        %v1118 = vmul.f32 %v925, %v1093
        %v1119 = vmul.f32 %v930, %v1093
        %v1120 = vmul.f32 %v933, %v1093
        %v1121 = vmul.f32 %v938, %v1093
        %v1122 = vmul.f32 %v941, %v1093
        %v1123 = vmul.f32 %v946, %v1093
        %v1124 = vmul.f32 %v949, %v1093
        %v1125 = vmul.f32 %v954, %v1093
        %v1126 = vmul.f32 %v957, %v1093
        %v1127 = vmul.f32 %v962, %v1093
        %v1128 = vmul.f32 %v965, %v1093
        %v1129 = vmul.f32 %v970, %v1093
        %v1130 = vmul.f32 %v973, %v1093
        %v1131 = vmul.f32 %v978, %v1093
        %v1132 = vmul.f32 %v981, %v1093
        %v1133 = vmul.f32 %v986, %v1093
        %v1134 = vmul.f32 %v989, %v1093
        %v1135 = vmul.f32 %v994, %v1093
        %v1136 = vmul.f32 %v997, %v1093
        %v1137 = vmul.f32 %v1002, %v1093
        %v1138 = vmul.f32 %v1005, %v1093
        %v1139 = vmul.f32 %v1010, %v1093
        %v1140 = vmul.f32 %v1013, %v1093
        %v1141 = vmul.f32 %v1018, %v1093
        %v1142 = vmul.f32 %v1021, %v1093
        %v1143 = vmul.f32 %v1026, %v1093
        %v1144 = vmul.f32 %v1029, %v1093
        %v1145 = vmul.f32 %v1034, %v1093
        %v1146 = vmul.f32 %v1037, %v1093
        %v1147 = vmul.f32 %v1042, %v1093
        %v1148 = vmul.f32 %v1045, %v1093
        %v1149 = vmul.f32 %v1050, %v1093
        %v1150 = vmul.f32 %v1053, %v1093
        %v1151 = vmul.f32 %v1058, %v1093
        %v1152 = vmul.f32 %v1061, %v1093
        %v1153 = vmul.f32 %v1066, %v1093
        %v1154 = vmul.f32 %v1069, %v1093
        %v1155 = vmul.f32 %v1074, %v1093
        %v1156 = vmul.f32 %v1077, %v1093
        %v1157 = vmul.f32 %v1082, %v1093
        %v1158 = vmul.f32 %v1085, %v1093
        %v1159 = vld [vmem:[%s276] sm:$0x1]
        %v1161 = vlaneseq
        %v1162 = vshrl.u32 %v1161, 7
        %v1163 = vsub.s32 0, %v1162
        %v1164 = vrot.slane %v1159, %v1163
        %v1166 = vadd.f32 %v1095, %v1164
        %v1167 = vadd.f32 %v1096, %v1164
        %v1168 = vadd.f32 %v1097, %v1164
        %v1169 = vadd.f32 %v1098, %v1164
        %v1170 = vadd.f32 %v1099, %v1164
        %v1171 = vadd.f32 %v1100, %v1164
        %v1172 = vadd.f32 %v1101, %v1164
        %v1173 = vadd.f32 %v1102, %v1164
        %v1174 = vadd.f32 %v1103, %v1164
        %v1175 = vadd.f32 %v1104, %v1164
        %v1176 = vadd.f32 %v1105, %v1164
        %v1177 = vadd.f32 %v1106, %v1164
        %v1178 = vadd.f32 %v1107, %v1164
        %v1179 = vadd.f32 %v1108, %v1164
        %v1180 = vadd.f32 %v1109, %v1164
        %v1181 = vadd.f32 %v1110, %v1164
        %v1182 = vadd.f32 %v1111, %v1164
        %v1183 = vadd.f32 %v1112, %v1164
        %v1184 = vadd.f32 %v1113, %v1164
        %v1185 = vadd.f32 %v1114, %v1164
        %v1186 = vadd.f32 %v1115, %v1164
        %v1187 = vadd.f32 %v1116, %v1164
        %v1188 = vadd.f32 %v1117, %v1164
        %v1189 = vadd.f32 %v1118, %v1164
        %v1190 = vadd.f32 %v1119, %v1164
        %v1191 = vadd.f32 %v1120, %v1164
        %v1192 = vadd.f32 %v1121, %v1164
        %v1193 = vadd.f32 %v1122, %v1164
        %v1194 = vadd.f32 %v1123, %v1164
        %v1195 = vadd.f32 %v1124, %v1164
        %v1196 = vadd.f32 %v1125, %v1164
        %v1197 = vadd.f32 %v1126, %v1164
        %v1198 = vadd.f32 %v1127, %v1164
        %v1199 = vadd.f32 %v1128, %v1164
        %v1200 = vadd.f32 %v1129, %v1164
        %v1201 = vadd.f32 %v1130, %v1164
        %v1202 = vadd.f32 %v1131, %v1164
        %v1203 = vadd.f32 %v1132, %v1164
        %v1204 = vadd.f32 %v1133, %v1164
        %v1205 = vadd.f32 %v1134, %v1164
        %v1206 = vadd.f32 %v1135, %v1164
        %v1207 = vadd.f32 %v1136, %v1164
        %v1208 = vadd.f32 %v1137, %v1164
        %v1209 = vadd.f32 %v1138, %v1164
        %v1210 = vadd.f32 %v1139, %v1164
        %v1211 = vadd.f32 %v1140, %v1164
        %v1212 = vadd.f32 %v1141, %v1164
        %v1213 = vadd.f32 %v1142, %v1164
        %v1214 = vadd.f32 %v1143, %v1164
        %v1215 = vadd.f32 %v1144, %v1164
        %v1216 = vadd.f32 %v1145, %v1164
        %v1217 = vadd.f32 %v1146, %v1164
        %v1218 = vadd.f32 %v1147, %v1164
        %v1219 = vadd.f32 %v1148, %v1164
        %v1220 = vadd.f32 %v1149, %v1164
        %v1221 = vadd.f32 %v1150, %v1164
        %v1222 = vadd.f32 %v1151, %v1164
        %v1223 = vadd.f32 %v1152, %v1164
        %v1224 = vadd.f32 %v1153, %v1164
        %v1225 = vadd.f32 %v1154, %v1164
        %v1226 = vadd.f32 %v1155, %v1164
        %v1227 = vadd.f32 %v1156, %v1164
        %v1228 = vadd.f32 %v1157, %v1164
        %v1229 = vadd.f32 %v1158, %v1164
        %v1230 = vmax.f32 %v1166, 0.0
        %v1231 = vmax.f32 %v1167, 0.0
        %v1232 = vmax.f32 %v1168, 0.0
        %v1233 = vmax.f32 %v1169, 0.0
        %v1234 = vmax.f32 %v1170, 0.0
        %v1235 = vmax.f32 %v1171, 0.0
        %v1236 = vmax.f32 %v1172, 0.0
        %v1237 = vmax.f32 %v1173, 0.0
        %v1238 = vmax.f32 %v1174, 0.0
        %v1239 = vmax.f32 %v1175, 0.0
        %v1240 = vmax.f32 %v1176, 0.0
        %v1241 = vmax.f32 %v1177, 0.0
        %v1242 = vmax.f32 %v1178, 0.0
        %v1243 = vmax.f32 %v1179, 0.0
        %v1244 = vmax.f32 %v1180, 0.0
        %v1245 = vmax.f32 %v1181, 0.0
        %v1246 = vmax.f32 %v1182, 0.0
        %v1247 = vmax.f32 %v1183, 0.0
        %v1248 = vmax.f32 %v1184, 0.0
        %v1249 = vmax.f32 %v1185, 0.0
        %v1250 = vmax.f32 %v1186, 0.0
        %v1251 = vmax.f32 %v1187, 0.0
        %v1252 = vmax.f32 %v1188, 0.0
        %v1253 = vmax.f32 %v1189, 0.0
        %v1254 = vmax.f32 %v1190, 0.0
        %v1255 = vmax.f32 %v1191, 0.0
        %v1256 = vmax.f32 %v1192, 0.0
        %v1257 = vmax.f32 %v1193, 0.0
        %v1258 = vmax.f32 %v1194, 0.0
        %v1259 = vmax.f32 %v1195, 0.0
        %v1260 = vmax.f32 %v1196, 0.0
        %v1261 = vmax.f32 %v1197, 0.0
        %v1262 = vmax.f32 %v1198, 0.0
        %v1263 = vmax.f32 %v1199, 0.0
        %v1264 = vmax.f32 %v1200, 0.0
        %v1265 = vmax.f32 %v1201, 0.0
        %v1266 = vmax.f32 %v1202, 0.0
        %v1267 = vmax.f32 %v1203, 0.0
        %v1268 = vmax.f32 %v1204, 0.0
        %v1269 = vmax.f32 %v1205, 0.0
        %v1270 = vmax.f32 %v1206, 0.0
        %v1271 = vmax.f32 %v1207, 0.0
        %v1272 = vmax.f32 %v1208, 0.0
        %v1273 = vmax.f32 %v1209, 0.0
        %v1274 = vmax.f32 %v1210, 0.0
        %v1275 = vmax.f32 %v1211, 0.0
        %v1276 = vmax.f32 %v1212, 0.0
        %v1277 = vmax.f32 %v1213, 0.0
        %v1278 = vmax.f32 %v1214, 0.0
        %v1279 = vmax.f32 %v1215, 0.0
        %v1280 = vmax.f32 %v1216, 0.0
        %v1281 = vmax.f32 %v1217, 0.0
        %v1282 = vmax.f32 %v1218, 0.0
        %v1283 = vmax.f32 %v1219, 0.0
        %v1284 = vmax.f32 %v1220, 0.0
        %v1285 = vmax.f32 %v1221, 0.0
        %v1286 = vmax.f32 %v1222, 0.0
        %v1287 = vmax.f32 %v1223, 0.0
        %v1288 = vmax.f32 %v1224, 0.0
        %v1289 = vmax.f32 %v1225, 0.0
        %v1290 = vmax.f32 %v1226, 0.0
        %v1291 = vmax.f32 %v1227, 0.0
        %v1292 = vmax.f32 %v1228, 0.0
        %v1293 = vmax.f32 %v1229, 0.0
        %v1294 = vpack.c.bf16 %v1231, %v1230
        %v1295 = vpack.c.bf16 %v1233, %v1232
        %v1296 = vpack.c.bf16 %v1235, %v1234
        %v1297 = vpack.c.bf16 %v1237, %v1236
        %v1298 = vpack.c.bf16 %v1239, %v1238
        %v1299 = vpack.c.bf16 %v1241, %v1240
        %v1300 = vpack.c.bf16 %v1243, %v1242
        %v1301 = vpack.c.bf16 %v1245, %v1244
        %v1302 = vpack.c.bf16 %v1247, %v1246
        %v1303 = vpack.c.bf16 %v1249, %v1248
        %v1304 = vpack.c.bf16 %v1251, %v1250
        %v1305 = vpack.c.bf16 %v1253, %v1252
        %v1306 = vpack.c.bf16 %v1255, %v1254
        %v1307 = vpack.c.bf16 %v1257, %v1256
        %v1308 = vpack.c.bf16 %v1259, %v1258
        %v1309 = vpack.c.bf16 %v1261, %v1260
        %v1310 = vpack.c.bf16 %v1263, %v1262
        %v1311 = vpack.c.bf16 %v1265, %v1264
        %v1312 = vpack.c.bf16 %v1267, %v1266
        %v1313 = vpack.c.bf16 %v1269, %v1268
        %v1314 = vpack.c.bf16 %v1271, %v1270
        %v1315 = vpack.c.bf16 %v1273, %v1272
        %v1316 = vpack.c.bf16 %v1275, %v1274
        %v1317 = vpack.c.bf16 %v1277, %v1276
        %v1318 = vpack.c.bf16 %v1279, %v1278
        %v1319 = vpack.c.bf16 %v1281, %v1280
        %v1320 = vpack.c.bf16 %v1283, %v1282
        %v1321 = vpack.c.bf16 %v1285, %v1284
        %v1322 = vpack.c.bf16 %v1287, %v1286
        %v1323 = vpack.c.bf16 %v1289, %v1288
        %v1324 = vpack.c.bf16 %v1291, %v1290
        %v1325 = vpack.c.bf16 %v1293, %v1292
        %v1358 = vunpack.c.l.b16 %v1294
        %v1359 = vunpack.c.h.b16 %v1294
        %v1360 = vunpack.c.l.b16 %v1295
        %v1361 = vunpack.c.h.b16 %v1295
        %v1362 = vunpack.c.l.b16 %v1296
        %v1363 = vunpack.c.h.b16 %v1296
        %v1364 = vunpack.c.l.b16 %v1297
        %v1365 = vunpack.c.h.b16 %v1297
        %v1366 = vunpack.c.l.b16 %v1298
        %v1367 = vunpack.c.h.b16 %v1298
        %v1368 = vunpack.c.l.b16 %v1299
        %v1369 = vunpack.c.h.b16 %v1299
        %v1370 = vunpack.c.l.b16 %v1300
        %v1371 = vunpack.c.h.b16 %v1300
        %v1372 = vunpack.c.l.b16 %v1301
        %v1373 = vunpack.c.h.b16 %v1301
        %v1374 = vunpack.c.l.b16 %v1302
        %v1375 = vunpack.c.h.b16 %v1302
        %v1376 = vunpack.c.l.b16 %v1303
        %v1377 = vunpack.c.h.b16 %v1303
        %v1378 = vunpack.c.l.b16 %v1304
        %v1379 = vunpack.c.h.b16 %v1304
        %v1380 = vunpack.c.l.b16 %v1305
        %v1381 = vunpack.c.h.b16 %v1305
        %v1382 = vunpack.c.l.b16 %v1306
        %v1383 = vunpack.c.h.b16 %v1306
        %v1384 = vunpack.c.l.b16 %v1307
        %v1385 = vunpack.c.h.b16 %v1307
        %v1386 = vunpack.c.l.b16 %v1308
        %v1387 = vunpack.c.h.b16 %v1308
        %v1388 = vunpack.c.l.b16 %v1309
        %v1389 = vunpack.c.h.b16 %v1309
        %v1390 = vunpack.c.l.b16 %v1310
        %v1391 = vunpack.c.h.b16 %v1310
        %v1392 = vunpack.c.l.b16 %v1311
        %v1393 = vunpack.c.h.b16 %v1311
        %v1394 = vunpack.c.l.b16 %v1312
        %v1395 = vunpack.c.h.b16 %v1312
        %v1396 = vunpack.c.l.b16 %v1313
        %v1397 = vunpack.c.h.b16 %v1313
        %v1398 = vunpack.c.l.b16 %v1314
        %v1399 = vunpack.c.h.b16 %v1314
        %v1400 = vunpack.c.l.b16 %v1315
        %v1401 = vunpack.c.h.b16 %v1315
        %v1402 = vunpack.c.l.b16 %v1316
        %v1403 = vunpack.c.h.b16 %v1316
        %v1404 = vunpack.c.l.b16 %v1317
        %v1405 = vunpack.c.h.b16 %v1317
        %v1406 = vunpack.c.l.b16 %v1318
        %v1407 = vunpack.c.h.b16 %v1318
        %v1408 = vunpack.c.l.b16 %v1319
        %v1409 = vunpack.c.h.b16 %v1319
        %v1410 = vunpack.c.l.b16 %v1320
        %v1411 = vunpack.c.h.b16 %v1320
        %v1412 = vunpack.c.l.b16 %v1321
        %v1413 = vunpack.c.h.b16 %v1321
        %v1414 = vunpack.c.l.b16 %v1322
        %v1415 = vunpack.c.h.b16 %v1322
        %v1416 = vunpack.c.l.b16 %v1323
        %v1417 = vunpack.c.h.b16 %v1323
        %v1418 = vunpack.c.l.b16 %v1324
        %v1419 = vunpack.c.h.b16 %v1324
        %v1420 = vunpack.c.l.b16 %v1325
        %v1421 = vunpack.c.h.b16 %v1325
        %v1422 = vpack.c.b16 %v1358, %v1358
        %v1423 = vpack.c.b16 %v1359, %v1359
        %v1424 = vpack.c.b16 %v1360, %v1360
        %v1425 = vpack.c.b16 %v1361, %v1361
        %v1426 = vpack.c.b16 %v1362, %v1362
        %v1427 = vpack.c.b16 %v1363, %v1363
        %v1428 = vpack.c.b16 %v1364, %v1364
        %v1429 = vpack.c.b16 %v1365, %v1365
        %v1430 = vpack.c.b16 %v1366, %v1366
        %v1431 = vpack.c.b16 %v1367, %v1367
        %v1432 = vpack.c.b16 %v1368, %v1368
        %v1433 = vpack.c.b16 %v1369, %v1369
        %v1434 = vpack.c.b16 %v1370, %v1370
        %v1435 = vpack.c.b16 %v1371, %v1371
        %v1436 = vpack.c.b16 %v1372, %v1372
        %v1437 = vpack.c.b16 %v1373, %v1373
        %v1438 = vpack.c.b16 %v1374, %v1374
        %v1439 = vpack.c.b16 %v1375, %v1375
        %v1440 = vpack.c.b16 %v1376, %v1376
        %v1441 = vpack.c.b16 %v1377, %v1377
        %v1442 = vpack.c.b16 %v1378, %v1378
        %v1443 = vpack.c.b16 %v1379, %v1379
        %v1444 = vpack.c.b16 %v1380, %v1380
        %v1445 = vpack.c.b16 %v1381, %v1381
        %v1446 = vpack.c.b16 %v1382, %v1382
        %v1447 = vpack.c.b16 %v1383, %v1383
        %v1448 = vpack.c.b16 %v1384, %v1384
        %v1449 = vpack.c.b16 %v1385, %v1385
        %v1450 = vpack.c.b16 %v1386, %v1386
        %v1451 = vpack.c.b16 %v1387, %v1387
        %v1452 = vpack.c.b16 %v1388, %v1388
        %v1453 = vpack.c.b16 %v1389, %v1389
        %v1454 = vpack.c.b16 %v1390, %v1390
        %v1455 = vpack.c.b16 %v1391, %v1391
        %v1456 = vpack.c.b16 %v1392, %v1392
        %v1457 = vpack.c.b16 %v1393, %v1393
        %v1458 = vpack.c.b16 %v1394, %v1394
        %v1459 = vpack.c.b16 %v1395, %v1395
        %v1460 = vpack.c.b16 %v1396, %v1396
        %v1461 = vpack.c.b16 %v1397, %v1397
        %v1462 = vpack.c.b16 %v1398, %v1398
        %v1463 = vpack.c.b16 %v1399, %v1399
        %v1464 = vpack.c.b16 %v1400, %v1400
        %v1465 = vpack.c.b16 %v1401, %v1401
        %v1466 = vpack.c.b16 %v1402, %v1402
        %v1467 = vpack.c.b16 %v1403, %v1403
        %v1468 = vpack.c.b16 %v1404, %v1404
        %v1469 = vpack.c.b16 %v1405, %v1405
        %v1470 = vpack.c.b16 %v1406, %v1406
        %v1471 = vpack.c.b16 %v1407, %v1407
        %v1472 = vpack.c.b16 %v1408, %v1408
        %v1473 = vpack.c.b16 %v1409, %v1409
        %v1474 = vpack.c.b16 %v1410, %v1410
        %v1475 = vpack.c.b16 %v1411, %v1411
        %v1476 = vpack.c.b16 %v1412, %v1412
        %v1477 = vpack.c.b16 %v1413, %v1413
        %v1478 = vpack.c.b16 %v1414, %v1414
        %v1479 = vpack.c.b16 %v1415, %v1415
        %v1480 = vpack.c.b16 %v1416, %v1416
        %v1481 = vpack.c.b16 %v1417, %v1417
        %v1482 = vpack.c.b16 %v1418, %v1418
        %v1483 = vpack.c.b16 %v1419, %v1419
        %v1484 = vpack.c.b16 %v1420, %v1420
        %v1485 = vpack.c.b16 %v1421, %v1421
        %vm1550 = vcmask 519168
        %1551 = vst.msk [vmem:[%s284] sm:$0xf] %vm1550, %v1422
        %1552 = vst.msk [vmem:[%s284 + $0x4] sm:$0xf] %vm1550, %v1423
        %1553 = vst.msk [vmem:[%s284 + $0x8] sm:$0xf] %vm1550, %v1424
        %1554 = vst.msk [vmem:[%s284 + $0xc] sm:$0xf] %vm1550, %v1425
        %1555 = vst.msk [vmem:[%s284 + $0x10] sm:$0xf] %vm1550, %v1426
        %1556 = vst.msk [vmem:[%s284 + $0x14] sm:$0xf] %vm1550, %v1427
        %1557 = vst.msk [vmem:[%s284 + $0x18] sm:$0xf] %vm1550, %v1428
        %1558 = vst.msk [vmem:[%s284 + $0x1c] sm:$0xf] %vm1550, %v1429
        %1559 = vst.msk [vmem:[%s284 + $0x20] sm:$0xf] %vm1550, %v1430
        %1560 = vst.msk [vmem:[%s284 + $0x24] sm:$0xf] %vm1550, %v1431
        %1561 = vst.msk [vmem:[%s284 + $0x28] sm:$0xf] %vm1550, %v1432
        %1562 = vst.msk [vmem:[%s284 + $0x2c] sm:$0xf] %vm1550, %v1433
        %1563 = vst.msk [vmem:[%s284 + $0x30] sm:$0xf] %vm1550, %v1434
        %1564 = vst.msk [vmem:[%s284 + $0x34] sm:$0xf] %vm1550, %v1435
        %1565 = vst.msk [vmem:[%s284 + $0x38] sm:$0xf] %vm1550, %v1436
        %1566 = vst.msk [vmem:[%s284 + $0x3c] sm:$0xf] %vm1550, %v1437
        %1567 = vst.msk [vmem:[%s284 + $0x40] sm:$0xf] %vm1550, %v1438
        %1568 = vst.msk [vmem:[%s284 + $0x44] sm:$0xf] %vm1550, %v1439
        %1569 = vst.msk [vmem:[%s284 + $0x48] sm:$0xf] %vm1550, %v1440
        %1570 = vst.msk [vmem:[%s284 + $0x4c] sm:$0xf] %vm1550, %v1441
        %1571 = vst.msk [vmem:[%s284 + $0x50] sm:$0xf] %vm1550, %v1442
        %1572 = vst.msk [vmem:[%s284 + $0x54] sm:$0xf] %vm1550, %v1443
        %1573 = vst.msk [vmem:[%s284 + $0x58] sm:$0xf] %vm1550, %v1444
        %1574 = vst.msk [vmem:[%s284 + $0x5c] sm:$0xf] %vm1550, %v1445
        %1575 = vst.msk [vmem:[%s284 + $0x60] sm:$0xf] %vm1550, %v1446
        %1576 = vst.msk [vmem:[%s284 + $0x64] sm:$0xf] %vm1550, %v1447
        %1577 = vst.msk [vmem:[%s284 + $0x68] sm:$0xf] %vm1550, %v1448
        %1578 = vst.msk [vmem:[%s284 + $0x6c] sm:$0xf] %vm1550, %v1449
        %1579 = vst.msk [vmem:[%s284 + $0x70] sm:$0xf] %vm1550, %v1450
        %1580 = vst.msk [vmem:[%s284 + $0x74] sm:$0xf] %vm1550, %v1451
        %1581 = vst.msk [vmem:[%s284 + $0x78] sm:$0xf] %vm1550, %v1452
        %1582 = vst.msk [vmem:[%s284 + $0x7c] sm:$0xf] %vm1550, %v1453
        %1583 = vst.msk [vmem:[%s284 + $0x80] sm:$0xf] %vm1550, %v1454
        %1584 = vst.msk [vmem:[%s284 + $0x84] sm:$0xf] %vm1550, %v1455
        %1585 = vst.msk [vmem:[%s284 + $0x88] sm:$0xf] %vm1550, %v1456
        %1586 = vst.msk [vmem:[%s284 + $0x8c] sm:$0xf] %vm1550, %v1457
        %1587 = vst.msk [vmem:[%s284 + $0x90] sm:$0xf] %vm1550, %v1458
        %1588 = vst.msk [vmem:[%s284 + $0x94] sm:$0xf] %vm1550, %v1459
        %1589 = vst.msk [vmem:[%s284 + $0x98] sm:$0xf] %vm1550, %v1460
        %1590 = vst.msk [vmem:[%s284 + $0x9c] sm:$0xf] %vm1550, %v1461
        %1591 = vst.msk [vmem:[%s284 + $0xa0] sm:$0xf] %vm1550, %v1462
        %1592 = vst.msk [vmem:[%s284 + $0xa4] sm:$0xf] %vm1550, %v1463
        %1593 = vst.msk [vmem:[%s284 + $0xa8] sm:$0xf] %vm1550, %v1464
        %1594 = vst.msk [vmem:[%s284 + $0xac] sm:$0xf] %vm1550, %v1465
        %1595 = vst.msk [vmem:[%s284 + $0xb0] sm:$0xf] %vm1550, %v1466
        %1596 = vst.msk [vmem:[%s284 + $0xb4] sm:$0xf] %vm1550, %v1467
        %1597 = vst.msk [vmem:[%s284 + $0xb8] sm:$0xf] %vm1550, %v1468
        %1598 = vst.msk [vmem:[%s284 + $0xbc] sm:$0xf] %vm1550, %v1469
        %1599 = vst.msk [vmem:[%s284 + $0xc0] sm:$0xf] %vm1550, %v1470
        %1600 = vst.msk [vmem:[%s284 + $0xc4] sm:$0xf] %vm1550, %v1471
        %1601 = vst.msk [vmem:[%s284 + $0xc8] sm:$0xf] %vm1550, %v1472
        %1602 = vst.msk [vmem:[%s284 + $0xcc] sm:$0xf] %vm1550, %v1473
        %1603 = vst.msk [vmem:[%s284 + $0xd0] sm:$0xf] %vm1550, %v1474
        %1604 = vst.msk [vmem:[%s284 + $0xd4] sm:$0xf] %vm1550, %v1475
        %1605 = vst.msk [vmem:[%s284 + $0xd8] sm:$0xf] %vm1550, %v1476
        %1606 = vst.msk [vmem:[%s284 + $0xdc] sm:$0xf] %vm1550, %v1477
        %1607 = vst.msk [vmem:[%s284 + $0xe0] sm:$0xf] %vm1550, %v1478
        %1608 = vst.msk [vmem:[%s284 + $0xe4] sm:$0xf] %vm1550, %v1479
        %1609 = vst.msk [vmem:[%s284 + $0xe8] sm:$0xf] %vm1550, %v1480
        %1610 = vst.msk [vmem:[%s284 + $0xec] sm:$0xf] %vm1550, %v1481
        %1611 = vst.msk [vmem:[%s284 + $0xf0] sm:$0xf] %vm1550, %v1482
        %1612 = vst.msk [vmem:[%s284 + $0xf4] sm:$0xf] %vm1550, %v1483
        %1613 = vst.msk [vmem:[%s284 + $0xf8] sm:$0xf] %vm1550, %v1484
        %1614 = vst.msk [vmem:[%s284 + $0xfc] sm:$0xf] %vm1550, %v1485
        %s1615 = smul.u32 64, %s22
        %p1616 = scmp.lt.s32.totalorder %s1615, 255
        %s1617 = scalar_select %p1616, %s1615, 255
        %p1618 = scmp.lt.s32.totalorder %s23, 0
        %s1619 = scalar_select %p1618, %s23, 0
        %s1620 = sadd.s32 %s1619, %s1617
        %s1621 = smul.addr %s1620, 4
        %s1622 = scalar_lea.vmem %s4, %s1621
        // Predicated region
        $region41: #{tpu_custom_call.1} parent=35 // pred_check
          %p1623 = pneg %p154
        $region42: #{tpu_custom_call.1} parent=35 // pred_check_branch
          %1625 = sbr.rel (%p1623) target = $region44
        $region43: #{tpu_custom_call.1} parent=35 // pred_region
          %s1626 = smul.u32 64, %s22
        $region44: #{tpu_custom_call.1} parent=35 // pred_fallthru
          _
      $region36: #{tpu_custom_call.1} parent=5 // pred_fallthru
        _
      %p1627 = scmp.le.s32.totalorder 2, %s13
      // Predicated region
      $region45: #{tpu_custom_call.1} parent=5 // pred_check
        %p1628 = pneg %p1627
      $region46: #{tpu_custom_call.1} parent=5 // pred_check_branch
        %1630 = sbr.rel (%p1628) target = $region48
      $region47: #{tpu_custom_call.1} parent=5 // pred_region
        %s1631 = ssub.s32 %s13, 2
        // Predicated region
        $region49: #{tpu_custom_call.1} parent=47 // pred_check
          %p1632 = pneg %p160
        $region50: #{tpu_custom_call.1} parent=47 // pred_check_branch
          %1634 = sbr.rel (%p1632) target = $region52
        $region51: #{tpu_custom_call.1} parent=47 // pred_region
          %s1635 = smul.u32 64, %s24
          %p1636 = scmp.lt.s32.totalorder %s1635, 255
          %s1637 = scalar_select %p1636, %s1635, 255
          %p1638 = scmp.lt.s32.totalorder %s25, 0
          %s1639 = scalar_select %p1638, %s25, 0
          %s1640 = sadd.s32 %s1639, %s1637
          %s1641 = smul.addr %s1640, 4
          %s1642 = scalar_lea.vmem %s4, %s1641
        $region52: #{tpu_custom_call.1} parent=47 // pred_fallthru
          _
      $region48: #{tpu_custom_call.1} parent=5 // pred_fallthru
        _
    $region6: #{tpu_custom_call.1} parent=1 // loop_footer
      %s17 = sadd.s32 1, %s13
    $region7: #{tpu_custom_call.1} parent=1 // loop_footer_branch
      %12 = sbr.rel target = $region3
    $region8: #{tpu_custom_call.1} parent=1 // loop_exit
      _
    %1643 = vsyncpa [#allocation3], 1
    %s1644 = scalar_lea.sflag [#allocation3], 1
    %1645 = vsyncpa %s1644, 1

</llo_original>
